<compile_context>
chip_gen: v5e
topology: v5e:2x2
jax: 0.10.0
libtpu: 0.0.40
codegen_flags: <defaults>
</compile_context>

<pallas_src>
import math
import functools

import jax
import jax.numpy as jnp
import numpy as np
from jax import lax
from jax.experimental import pallas as pl
from jax.experimental.pallas import tpu as pltpu

_MASK_VALUE = -0.7 * float(np.finfo(np.float32).max)
_VMEM_LIMIT = 48 * 1024 * 1024   # safe on v5e/v6e (128 MiB) and v7x (64 MiB)


# ---------------------------------------------------------------------------
# Kernel 1: fused (grouped) QKV projection + rotary embedding.
#   grid = (B, kv_group, q_block); the (dim, group_w) weight slab index
#   depends only on the group axis, so it stays VMEM-resident across all
#   q-blocks of a batch (x is re-streamed n_kv_heads times instead, which is
#   cheaper for GQA models).
# ---------------------------------------------------------------------------
def _qkv_rope_kernel(x_ref, w_ref, cos_ref, sin_ref, q_ref, k_ref, v_ref,
                     *, n_rep, head_dim):
    hd2 = head_dim // 2
    x = x_ref[0]                                    # (block_q, dim)
    # One wide MXU matmul for this kv-group: [q_0 .. q_{n_rep-1} | k | v].
    qkv = jnp.dot(x, w_ref[...], preferred_element_type=jnp.float32)

    cos = cos_ref[...]                              # (block_q, hd) = [ cos | cos ]
    sin = sin_ref[...]                              # (block_q, hd) = [-sin | sin ]

    def rope(t):                                    # halves layout: [real | imag]
        # t*cos + rotate_half(t)*sin   (rotate by hd/2 runs on the XLU slot)
        return t * cos + pltpu.roll(t, hd2, 1) * sin

    for r in range(n_rep):                          # static: slice + VPU + store
        q_ref[0, r] = rope(qkv[:, r * head_dim:(r + 1) * head_dim]).astype(q_ref.dtype)
    k_ref[0, 0] = rope(qkv[:, n_rep * head_dim:(n_rep + 1) * head_dim]).astype(k_ref.dtype)
    v_ref[0, 0] = qkv[:, (n_rep + 1) * head_dim:(n_rep + 2) * head_dim].astype(v_ref.dtype)


# ---------------------------------------------------------------------------
# Kernel 2: flash attention (online softmax, causal).
#   grid = (B, heads, T) where T enumerates only the lower-triangular
#   (q_block, kv_block) pairs (scalar-prefetched schedule).  The diagonal
#   tile is the only one that pays for the causal mask.
# ---------------------------------------------------------------------------
def _flash_attn_kernel(qi_ref, kv_ref, q_ref, k_ref, v_ref, o_ref,
                       m_sc, l_sc, acc_sc, *, block_q, block_k):
    t = pl.program_id(2)
    qi = qi_ref[t]
    kv = kv_ref[t]
    q_start = qi * block_q
    kv_start = kv * block_k
    last_kv = (q_start + block_q - 1) // block_k     # last kv block of this q row

    @pl.when(kv == 0)
    def _init_row_state():
        m_sc[...] = jnp.full_like(m_sc, _MASK_VALUE)
        l_sc[...] = jnp.zeros_like(l_sc)
        acc_sc[...] = jnp.zeros_like(acc_sc)

    def softmax_step(masked):
        q = q_ref[0, 0]                              # (block_q, head_dim), bf16
        k = k_ref[0, 0]                              # (block_k, head_dim), bf16
        v = v_ref[0, 0]
        # Score scale already folded into the wq columns -> no per-step mul.
        s = lax.dot_general(q, k, (((1,), (1,)), ((), ())),
                            preferred_element_type=jnp.float32)
        if masked:                                   # only the diagonal-crossing tile
            row = q_start + lax.broadcasted_iota(jnp.int32, (block_q, block_k), 0)
            col = kv_start + lax.broadcasted_iota(jnp.int32, (block_q, block_k), 1)
            s = jnp.where(col <= row, s, _MASK_VALUE)
        m_prev = m_sc[...]
        m_new = jnp.maximum(m_prev, jnp.max(s, axis=-1, keepdims=True))
        alpha = jnp.exp(m_prev - m_new)
        p = jnp.exp(s - m_new)
        l_sc[...] = alpha * l_sc[...] + jnp.sum(p, axis=-1, keepdims=True)
        acc_sc[...] = alpha * acc_sc[...] + jnp.dot(
            p.astype(v.dtype), v, preferred_element_type=jnp.float32)
        m_sc[...] = m_new

    crosses_diag = kv_start + block_k - 1 > q_start   # tile touches the diagonal

    @pl.when(jnp.logical_not(crosses_diag))
    def _unmasked_fast_path():
        softmax_step(False)

    @pl.when(crosses_diag)
    def _masked_path():
        softmax_step(True)

    @pl.when(kv == last_kv)
    def _finish_row():
        inv_l = pl.reciprocal(l_sc[...], approx=True)
        o_ref[0] = (acc_sc[...] * inv_l).astype(o_ref.dtype)


# ---------------------------------------------------------------------------
# Kernel 3: plain tiled GEMM for the output projection (wo un-fused).
# ---------------------------------------------------------------------------
def _matmul_kernel(a_ref, b_ref, o_ref, acc_ref):
    @pl.when(pl.program_id(2) == 0)
    def _():
        acc_ref[...] = jnp.zeros_like(acc_ref)
    acc_ref[...] += jnp.dot(a_ref[...], b_ref[...],
                            preferred_element_type=jnp.float32)
    @pl.when(pl.program_id(2) == pl.num_programs(2) - 1)
    def _():
        o_ref[...] = acc_ref[...].astype(o_ref.dtype)


# ---------------------------------------------------------------------------
# Wrapper
# ---------------------------------------------------------------------------
def attention_forward(x, wq, wk, wv, wo, freqs_cos, freqs_sin, *,
                      n_heads, n_kv_heads, block_q=512, block_k=512,
                      compute_dtype=jnp.bfloat16):
    B, S, dim = x.shape
    assert n_heads % n_kv_heads == 0
    head_dim = dim // n_heads
    hd2 = head_dim // 2
    n_rep = n_heads // n_kv_heads
    assert head_dim % 128 == 0, "head_dim must be lane-aligned (multiple of 128)"

    block_q = min(block_q, S)
    block_k = min(block_k, S)
    assert S % block_q == 0 and S % block_k == 0
    assert block_q % 16 == 0 and block_k % 16 == 0, "bf16 needs sublane multiples of 16"

    group_w = (n_rep + 2) * head_dim
    cdt = compute_dtype
    scale = 1.0 / math.sqrt(head_dim)

    # Per-head "halves" permutation of the q/k weight columns:
    # (r0,i0,r1,i1,...) -> (r0,r1,...,i0,i1,...).  The same permutation on q
    # and k leaves the attention scores (hence the output) unchanged.
    # The 1/sqrt(head_dim) scale is folded into wq (RoPE is linear -> exact).
    idx = np.arange(head_dim).reshape(hd2, 2).T.reshape(-1)
    wq_p = wq.reshape(dim, n_heads, head_dim)[:, :, idx] * scale
    wk_p = wk.reshape(dim, n_kv_heads, head_dim)[:, :, idx]
    wv_r = wv.reshape(dim, n_kv_heads, head_dim)

    # Group-major fused weight: group g = [q heads g*n_rep..(g+1)*n_rep-1 | k_g | v_g].
    wq_g = wq_p.reshape(dim, n_kv_heads, n_rep, head_dim)
    w_qkv = jnp.concatenate(
        [wq_g, wk_p[:, :, None, :], wv_r[:, :, None, :]], axis=2
    ).reshape(dim, n_kv_heads * group_w).astype(cdt)

    x_c = x.astype(cdt)
    wo_c = wo.astype(cdt)

    # Full-width RoPE tables for the halves layout (rotate-half formulation).
    cos_full = jnp.concatenate([freqs_cos, freqs_cos], axis=-1).astype(jnp.float32)
    sin_signed = jnp.concatenate([-freqs_sin, freqs_sin], axis=-1).astype(jnp.float32)

    n_qb = S // block_q

    # ---- Kernel 1: projection + RoPE ---------------------------------------
    q, k, v = pl.pallas_call(
        functools.partial(_qkv_rope_kernel, n_rep=n_rep, head_dim=head_dim),
        out_shape=(
            jax.ShapeDtypeStruct((B, n_heads, S, head_dim), cdt),
            jax.ShapeDtypeStruct((B, n_kv_heads, S, head_dim), cdt),
            jax.ShapeDtypeStruct((B, n_kv_heads, S, head_dim), cdt),
        ),
        grid_spec=pltpu.PrefetchScalarGridSpec(
            num_scalar_prefetch=0,
            grid=(B, n_kv_heads, n_qb),            # qi innermost -> weight reused
            in_specs=[
                pl.BlockSpec((1, block_q, dim), lambda b, g, qi: (b, qi, 0)),
                pl.BlockSpec((dim, group_w), lambda b, g, qi: (0, g)),
                pl.BlockSpec((block_q, head_dim), lambda b, g, qi: (qi, 0)),
                pl.BlockSpec((block_q, head_dim), lambda b, g, qi: (qi, 0)),
            ],
            out_specs=[
                pl.BlockSpec((1, n_rep, block_q, head_dim),
                             lambda b, g, qi: (b, g, qi, 0)),
                pl.BlockSpec((1, 1, block_q, head_dim),
                             lambda b, g, qi: (b, g, qi, 0)),
                pl.BlockSpec((1, 1, block_q, head_dim),
                             lambda b, g, qi: (b, g, qi, 0)),
            ],
        ),
        compiler_params=pltpu.CompilerParams(
            dimension_semantics=("parallel", "parallel", "parallel"),
            vmem_limit_bytes=_VMEM_LIMIT),
    )(x_c, w_qkv, cos_full, sin_signed)

    # ---- Kernel 2: flash attention (lower-triangular schedule) -------------
    # Host-precomputed (qi, kv) schedule covering only causal blocks.
    qi_list, kv_list = [], []
    for qi in range(n_qb):
        last = (qi * block_q + block_q - 1) // block_k
        for kvb in range(last + 1):
            qi_list.append(qi)
            kv_list.append(kvb)
    qi_of_t = jnp.asarray(qi_list, dtype=jnp.int32)
    kv_of_t = jnp.asarray(kv_list, dtype=jnp.int32)
    n_steps = len(qi_list)

    attn = pl.pallas_call(
        functools.partial(_flash_attn_kernel, block_q=block_q, block_k=block_k),
        out_shape=jax.ShapeDtypeStruct((B, S, dim), cdt),
        grid_spec=pltpu.PrefetchScalarGridSpec(
            num_scalar_prefetch=2,
            grid=(B, n_heads, n_steps),
            in_specs=[
                pl.BlockSpec((1, 1, block_q, head_dim),
                             lambda b, h, t, qt, kt: (b, h, qt[t], 0)),
                pl.BlockSpec((1, 1, block_k, head_dim),
                             lambda b, h, t, qt, kt: (b, h // n_rep, kt[t], 0)),
                pl.BlockSpec((1, 1, block_k, head_dim),
                             lambda b, h, t, qt, kt: (b, h // n_rep, kt[t], 0)),
            ],
            out_specs=pl.BlockSpec((1, block_q, head_dim),
                                   lambda b, h, t, qt, kt: (b, qt[t], h)),
            scratch_shapes=[
                pltpu.VMEM((block_q, 1), jnp.float32),          # running max m
                pltpu.VMEM((block_q, 1), jnp.float32),          # running sum l
                pltpu.VMEM((block_q, head_dim), jnp.float32),   # unnormalized out
            ],
        ),
        compiler_params=pltpu.CompilerParams(
            dimension_semantics=("parallel", "parallel", "arbitrary"),
            vmem_limit_bytes=_VMEM_LIMIT),
    )(qi_of_t, kv_of_t, q, k, v)

    # ---- Kernel 3: output projection (un-fused wo, full-K GEMM) ------------
    a2d = attn.reshape(B * S, dim)
    M, K = a2d.shape
    N = dim
    tm = min(256, M)
    tn = min(512, N)
    tk = min(512, K)
    assert M % tm == 0 and N % tn == 0 and K % tk == 0

    out2d = pl.pallas_call(
        _matmul_kernel,
        out_shape=jax.ShapeDtypeStruct((M, N), x.dtype),
        grid_spec=pltpu.PrefetchScalarGridSpec(
            num_scalar_prefetch=0,
            grid=(M // tm, N // tn, K // tk),
            in_specs=[pl.BlockSpec((tm, tk), lambda i, j, kk: (i, kk)),
                      pl.BlockSpec((tk, tn), lambda i, j, kk: (kk, j))],
            out_specs=pl.BlockSpec((tm, tn), lambda i, j, kk: (i, j)),
            scratch_shapes=[pltpu.VMEM((tm, tn), jnp.float32)],
        ),
        compiler_params=pltpu.CompilerParams(
            dimension_semantics=("parallel", "parallel", "arbitrary")),
    )(a2d, wo_c)
    return out2d.reshape(B, S, dim)


# ---------------------------------------------------------------------------
# Pure-JAX reference (port of the PyTorch module).
# ---------------------------------------------------------------------------
def reference_attention(x, wq, wk, wv, wo, cos, sin, n_heads, n_kv_heads):
    B, S, dim = x.shape
    hd = dim // n_heads
    n_rep = n_heads // n_kv_heads

    xq = (x @ wq).reshape(B, S, n_heads, hd)
    xk = (x @ wk).reshape(B, S, n_kv_heads, hd)
    xv = (x @ wv).reshape(B, S, n_kv_heads, hd)

    def rope(t):
        tr = t.reshape(t.shape[:-1] + (hd // 2, 2))
        t_r, t_i = tr[..., 0], tr[..., 1]
        c = cos[None, :, None, :]
        s = sin[None, :, None, :]
        o_r = t_r * c - t_i * s
        o_i = t_r * s + t_i * c
        return jnp.stack([o_r, o_i], axis=-1).reshape(t.shape)

    xq, xk = rope(xq), rope(xk)
    xk = jnp.repeat(xk, n_rep, axis=2)               # repeat_kv
    xv = jnp.repeat(xv, n_rep, axis=2)
    xq, xk, xv = (t.transpose(0, 2, 1, 3) for t in (xq, xk, xv))

    scores = jnp.einsum('bhqd,bhkd->bhqk', xq, xk) / math.sqrt(hd)
    mask = jnp.where(jnp.tril(jnp.ones((S, S), bool)), 0.0, -jnp.inf)
    scores = jax.nn.softmax(scores + mask[None, None], axis=-1)
    out = jnp.einsum('bhqk,bhkd->bhqd', scores, xv)
    out = out.transpose(0, 2, 1, 3).reshape(B, S, dim)
    return out @ wo


if __name__ == "__main__":
    # Small but layout-friendly shapes: head_dim = 128 (LLaMA-like), GQA 4q/2kv.
    B, S = 2, 128
    dim, n_heads, n_kv_heads = 512, 4, 2
    hd = dim // n_heads                               # 128

    key = jax.random.PRNGKey(0)
    kx, kq, kk, kvk, ko = jax.random.split(key, 5)
    wscale = 1.0 / math.sqrt(dim)

    def bf16_round(a):                                # bf16-representable f32 values
        return a.astype(jnp.bfloat16).astype(jnp.float32)

    x = bf16_round(jax.random.normal(kx, (B, S, dim), jnp.float32))
    wq = bf16_round(jax.random.normal(kq, (dim, n_heads * hd), jnp.float32) * wscale)
    wk = bf16_round(jax.random.normal(kk, (dim, n_kv_heads * hd), jnp.float32) * wscale)
    wv = bf16_round(jax.random.normal(kvk, (dim, n_kv_heads * hd), jnp.float32) * wscale)
    wo = bf16_round(jax.random.normal(ko, (n_heads * hd, dim), jnp.float32) * wscale)

    # precompute_freqs_cis equivalent
    freqs = 1.0 / (10000.0 ** (jnp.arange(0, hd, 2, dtype=jnp.float32) / hd))
    t = jnp.arange(S, dtype=jnp.float32)
    ang = jnp.outer(t, freqs)
    freqs_cos, freqs_sin = jnp.cos(ang), jnp.sin(ang)

    # block_q = block_k = 32 -> 4 q-blocks, lower-triangular schedule of 10
    # steps: exercises multi-block online softmax, diagonal-only masking and
    # the scalar-prefetched causal schedule.
    out = attention_forward(x, wq, wk, wv, wo, freqs_cos, freqs_sin,
                            n_heads=n_heads, n_kv_heads=n_kv_heads,
                            block_q=32, block_k=32)
    out = jax.block_until_ready(out)

    ref = reference_attention(x, wq, wk, wv, wo, freqs_cos, freqs_sin,
                              n_heads, n_kv_heads)
    np.testing.assert_allclose(np.asarray(out, dtype=np.float32),
                               np.asarray(ref, dtype=np.float32),
                               atol=5e-2, rtol=5e-2)   # bf16 matmuls, f32 accumulation
    print("KERNEL_OK")
</pallas_src>

<mosaic_0001>
module attributes {stable_mosaic.version = 11 : i64} {
  func.func @_qkv_rope_kernel(%arg0: i32, %arg1: i32, %arg2: i32, %arg3: memref<1x32x512xbf16, #tpu.memory_space<vmem>>, %arg4: memref<512x512xbf16, #tpu.memory_space<vmem>>, %arg5: memref<32x128xf32, #tpu.memory_space<vmem>>, %arg6: memref<32x128xf32, #tpu.memory_space<vmem>>, %arg7: memref<1x2x32x128xbf16, #tpu.memory_space<vmem>>, %arg8: memref<1x1x32x128xbf16, #tpu.memory_space<vmem>>, %arg9: memref<1x1x32x128xbf16, #tpu.memory_space<vmem>>) attributes {dimension_semantics = [#tpu.dimension_semantics<parallel>, #tpu.dimension_semantics<parallel>, #tpu.dimension_semantics<parallel>], iteration_bounds = array<i64: 2, 2, 4>, scalar_prefetch = 0 : i64, scratch_operands = 0 : i64, tpu.core_type = #tpu.core_type<tc>, window_params = [{transform_indices = @transform_0, window_bounds = array<i64: 1, 32, 512>}, {transform_indices = @transform_1, window_bounds = array<i64: 512, 512>}, {transform_indices = @transform_2, window_bounds = array<i64: 32, 128>}, {transform_indices = @transform_3, window_bounds = array<i64: 32, 128>}, {transform_indices = @transform_4, window_bounds = array<i64: 1, 2, 32, 128>}, {transform_indices = @transform_5, window_bounds = array<i64: 1, 1, 32, 128>}, {transform_indices = @transform_6, window_bounds = array<i64: 1, 1, 32, 128>}]} {
    %c0 = arith.constant 0 : index
    %c0_0 = arith.constant 0 : index
    %c0_1 = arith.constant 0 : index
    %0 = vector.load %arg3[%c0, %c0_0, %c0_1] : memref<1x32x512xbf16, #tpu.memory_space<vmem>>, vector<1x32x512xbf16>
    %1 = vector.shape_cast %0 : vector<1x32x512xbf16> to vector<32x512xbf16>
    %c0_2 = arith.constant 0 : index
    %c0_3 = arith.constant 0 : index
    %2 = vector.load %arg4[%c0_2, %c0_3] : memref<512x512xbf16, #tpu.memory_space<vmem>>, vector<512x512xbf16>
    %cst = arith.constant dense<0.000000e+00> : vector<32x512xf32>
    %3 = tpu.matmul %1, %2, %cst {dimension_numbers = #tpu.dot_dimension_numbers<[1], [0], [0], [1], [0, 0, 1, 1], [], []>} : vector<32x512xbf16>, vector<512x512xbf16>, vector<32x512xf32> -> vector<32x512xf32>
    %c0_4 = arith.constant 0 : index
    %c0_5 = arith.constant 0 : index
    %4 = vector.load %arg5[%c0_4, %c0_5] : memref<32x128xf32, #tpu.memory_space<vmem>>, vector<32x128xf32>
    %c0_6 = arith.constant 0 : index
    %c0_7 = arith.constant 0 : index
    %5 = vector.load %arg6[%c0_6, %c0_7] : memref<32x128xf32, #tpu.memory_space<vmem>>, vector<32x128xf32>
    %6 = vector.extract_strided_slice %3 {offsets = [0, 0], sizes = [32, 128], strides = [1, 1]} : vector<32x512xf32> to vector<32x128xf32>
    %7 = arith.mulf %6, %4 : vector<32x128xf32>
    %c64_i32 = arith.constant 64 : i32
    %8 = tpu.dynamic_rotate %6 by %c64_i32 dim 1 : vector<32x128xf32>, i32 -> vector<32x128xf32>
    %9 = arith.mulf %8, %5 : vector<32x128xf32>
    %10 = arith.addf %7, %9 : vector<32x128xf32>
    %11 = arith.truncf %10 : vector<32x128xf32> to vector<32x128xbf16>
    %c0_8 = arith.constant 0 : index
    %c0_9 = arith.constant 0 : index
    %c0_10 = arith.constant 0 : index
    %c0_11 = arith.constant 0 : index
    %12 = vector.load %arg7[%c0_8, %c0_9, %c0_10, %c0_11] : memref<1x2x32x128xbf16, #tpu.memory_space<vmem>>, vector<1x1x32x128xbf16>
    %13 = vector.shape_cast %12 : vector<1x1x32x128xbf16> to vector<32x128xbf16>
    %14 = vector.shape_cast %11 : vector<32x128xbf16> to vector<1x1x32x128xbf16>
    tpu.vector_store %arg7[%c0_8, %c0_9, %c0_10, %c0_11], %14 {strides = array<i32>} : memref<1x2x32x128xbf16, #tpu.memory_space<vmem>>, vector<1x1x32x128xbf16>,
    %15 = vector.extract_strided_slice %3 {offsets = [0, 128], sizes = [32, 128], strides = [1, 1]} : vector<32x512xf32> to vector<32x128xf32>
    %16 = arith.mulf %15, %4 : vector<32x128xf32>
    %c64_i32_12 = arith.constant 64 : i32
    %17 = tpu.dynamic_rotate %15 by %c64_i32_12 dim 1 : vector<32x128xf32>, i32 -> vector<32x128xf32>
    %18 = arith.mulf %17, %5 : vector<32x128xf32>
    %19 = arith.addf %16, %18 : vector<32x128xf32>
    %20 = arith.truncf %19 : vector<32x128xf32> to vector<32x128xbf16>
    %c0_13 = arith.constant 0 : index
    %c1 = arith.constant 1 : index
    %c0_14 = arith.constant 0 : index
    %c0_15 = arith.constant 0 : index
    %21 = vector.load %arg7[%c0_13, %c1, %c0_14, %c0_15] : memref<1x2x32x128xbf16, #tpu.memory_space<vmem>>, vector<1x1x32x128xbf16>
    %22 = vector.shape_cast %21 : vector<1x1x32x128xbf16> to vector<32x128xbf16>
    %23 = vector.shape_cast %20 : vector<32x128xbf16> to vector<1x1x32x128xbf16>
    tpu.vector_store %arg7[%c0_13, %c1, %c0_14, %c0_15], %23 {strides = array<i32>} : memref<1x2x32x128xbf16, #tpu.memory_space<vmem>>, vector<1x1x32x128xbf16>,
    %24 = vector.extract_strided_slice %3 {offsets = [0, 256], sizes = [32, 128], strides = [1, 1]} : vector<32x512xf32> to vector<32x128xf32>
    %25 = arith.mulf %24, %4 : vector<32x128xf32>
    %c64_i32_16 = arith.constant 64 : i32
    %26 = tpu.dynamic_rotate %24 by %c64_i32_16 dim 1 : vector<32x128xf32>, i32 -> vector<32x128xf32>
    %27 = arith.mulf %26, %5 : vector<32x128xf32>
    %28 = arith.addf %25, %27 : vector<32x128xf32>
    %29 = arith.truncf %28 : vector<32x128xf32> to vector<32x128xbf16>
    %c0_17 = arith.constant 0 : index
    %c0_18 = arith.constant 0 : index
    %c0_19 = arith.constant 0 : index
    %c0_20 = arith.constant 0 : index
    %30 = vector.load %arg8[%c0_17, %c0_18, %c0_19, %c0_20] : memref<1x1x32x128xbf16, #tpu.memory_space<vmem>>, vector<1x1x32x128xbf16>
    %31 = vector.shape_cast %30 : vector<1x1x32x128xbf16> to vector<32x128xbf16>
    %32 = vector.shape_cast %29 : vector<32x128xbf16> to vector<1x1x32x128xbf16>
    tpu.vector_store %arg8[%c0_17, %c0_18, %c0_19, %c0_20], %32 {strides = array<i32>} : memref<1x1x32x128xbf16, #tpu.memory_space<vmem>>, vector<1x1x32x128xbf16>,
    %33 = vector.extract_strided_slice %3 {offsets = [0, 384], sizes = [32, 128], strides = [1, 1]} : vector<32x512xf32> to vector<32x128xf32>
    %34 = arith.truncf %33 : vector<32x128xf32> to vector<32x128xbf16>
    %c0_21 = arith.constant 0 : index
    %c0_22 = arith.constant 0 : index
    %c0_23 = arith.constant 0 : index
    %c0_24 = arith.constant 0 : index
    %35 = vector.load %arg9[%c0_21, %c0_22, %c0_23, %c0_24] : memref<1x1x32x128xbf16, #tpu.memory_space<vmem>>, vector<1x1x32x128xbf16>
    %36 = vector.shape_cast %35 : vector<1x1x32x128xbf16> to vector<32x128xbf16>
    %37 = vector.shape_cast %34 : vector<32x128xbf16> to vector<1x1x32x128xbf16>
    tpu.vector_store %arg9[%c0_21, %c0_22, %c0_23, %c0_24], %37 {strides = array<i32>} : memref<1x1x32x128xbf16, #tpu.memory_space<vmem>>, vector<1x1x32x128xbf16>,
    return
  }
  func.func @transform_0(%arg0: i32, %arg1: i32, %arg2: i32) -> (i32, i32, i32) {
    %c0_i32 = arith.constant 0 : i32
    %c0_i32_0 = arith.constant 0 : i32
    return %arg0, %arg2, %c0_i32 : i32, i32, i32
  }
  func.func @transform_1(%arg0: i32, %arg1: i32, %arg2: i32) -> (i32, i32) {
    %c0_i32 = arith.constant 0 : i32
    %c0_i32_0 = arith.constant 0 : i32
    return %c0_i32, %arg1 : i32, i32
  }
  func.func @transform_2(%arg0: i32, %arg1: i32, %arg2: i32) -> (i32, i32) {
    %c0_i32 = arith.constant 0 : i32
    %c0_i32_0 = arith.constant 0 : i32
    return %arg2, %c0_i32 : i32, i32
  }
  func.func @transform_3(%arg0: i32, %arg1: i32, %arg2: i32) -> (i32, i32) {
    %c0_i32 = arith.constant 0 : i32
    %c0_i32_0 = arith.constant 0 : i32
    return %arg2, %c0_i32 : i32, i32
  }
  func.func @transform_4(%arg0: i32, %arg1: i32, %arg2: i32) -> (i32, i32, i32, i32) {
    %c0_i32 = arith.constant 0 : i32
    %c0_i32_0 = arith.constant 0 : i32
    return %arg0, %arg1, %arg2, %c0_i32 : i32, i32, i32, i32
  }
  func.func @transform_5(%arg0: i32, %arg1: i32, %arg2: i32) -> (i32, i32, i32, i32) {
    %c0_i32 = arith.constant 0 : i32
    %c0_i32_0 = arith.constant 0 : i32
    return %arg0, %arg1, %arg2, %c0_i32 : i32, i32, i32, i32
  }
  func.func @transform_6(%arg0: i32, %arg1: i32, %arg2: i32) -> (i32, i32, i32, i32) {
    %c0_i32 = arith.constant 0 : i32
    %c0_i32_0 = arith.constant 0 : i32
    return %arg0, %arg1, %arg2, %c0_i32 : i32, i32, i32, i32
  }
}

</mosaic_0001>

<llo_original>
// kernel: tpu_custom_call.1
$region0: #{tpu_custom_call.1}
  #allocation0 [shape = 'u32[]', space=smem, size = 0x4, offset = 0x4, fixed_abs, tag = 'smem constant byte address 0x4 - core index']
  #allocation1 [shape = 'u32[72,128]{1,0:T(1,128)}', space=vmem, size = 0x9000, scoped, tag = 'internal scratch']
  #allocation14 [shape = 's32[]', space=sflag, size = 0x4, offset = 0, fixed_abs, tag = 'sflag constant byte address 0x0 - dummy sync flag']
  %s0 = inlined_call_operand.hbm [shape: bf16[2,128,512], index: 0, kind: input, shape index: {}]
  %s1 = inlined_call_operand.hbm [shape: bf16[512,1024], index: 1, kind: input, shape index: {}]
  %s2 = inlined_call_operand.hbm [shape: f32[128,128], index: 2, kind: input, shape index: {}]
  %s3 = inlined_call_operand.hbm [shape: f32[128,128], index: 3, kind: input, shape index: {}]
  %s4 = inlined_call_operand.hbm [shape: bf16[2,4,128,128], index: 4, kind: output, shape index: {0}]
  %s5 = inlined_call_operand.hbm [shape: bf16[2,2,128,128], index: 5, kind: output, shape index: {1}]
  %s6 = inlined_call_operand.hbm [shape: bf16[2,2,128,128], index: 6, kind: output, shape index: {2}]
  %7 = xla_tuple %s4, %s5, %s6
  %s8 = sld [smem:[#allocation0]]
  $region81: #{tpu_custom_call.1} parent=0
    _
  %s10 = ssub.s32 1, %s8
  %s11 = scalar_select 0, %s10, %s8
  $region1: #{tpu_custom_call.1} parent=0
    #allocation2 [shape = 'u8[65536]{0}', space=vmem, size = 0x10000, scoped, tag = 'input window, operand 0']
    #allocation3 [shape = 's32[2]{0}', space=sflag, size = 0x8, scoped, tag = 'scoped memory for tpu_custom_call.1']
    #allocation4 [shape = 's32[2]{0}', space=sflag, size = 0x8, scoped, tag = 'scoped memory for tpu_custom_call.1']
    #allocation5 [shape = 'u8[1048576]{0}', space=vmem, size = 0x100000, scoped, tag = 'input window, operand 1']
    #allocation6 [shape = 's32[2]{0}', space=sflag, size = 0x8, scoped, tag = 'scoped memory for tpu_custom_call.1']
    #allocation7 [shape = 'u8[32768]{0}', space=vmem, size = 0x8000, scoped, tag = 'input window, operand 2']
    #allocation8 [shape = 'u8[32768]{0}', space=vmem, size = 0x8000, scoped, tag = 'input window, operand 3']
    #allocation9 [shape = 's32[2]{0}', space=sflag, size = 0x8, scoped, tag = 'scoped memory for tpu_custom_call.1']
    #allocation10 [shape = 'u8[32768]{0}', space=vmem, size = 0x8000, scoped, tag = 'output window, operand 0']
    #allocation11 [shape = 'u8[16384]{0}', space=vmem, size = 0x4000, scoped, tag = 'output window, operand 1']
    #allocation12 [shape = 's32[2]{0}', space=sflag, size = 0x8, scoped, tag = 'scoped memory for tpu_custom_call.1']
    #allocation13 [shape = 'u8[16384]{0}', space=vmem, size = 0x4000, scoped, tag = 'output window, operand 2']
    %12 = vsyncpa [#allocation3], 0
    %s13 = scalar_lea.sflag [#allocation3], 1
    %14 = vsyncpa %s13, 0
    %15 = vsyncpa [#allocation6], 0
    %s16 = scalar_lea.sflag [#allocation6], 1
    %17 = vsyncpa %s16, 0
    %18 = vsyncpa [#allocation9], 0
    %s19 = scalar_lea.sflag [#allocation9], 1
    %20 = vsyncpa %s19, 0
    %21 = vsyncpa [#allocation4], 0
    %s22 = scalar_lea.sflag [#allocation4], 1
    %23 = vsyncpa %s22, 0
    %24 = vsyncpa [#allocation12], 0
    %s25 = scalar_lea.sflag [#allocation12], 1
    %26 = vsyncpa %s25, 0
    loop: start=0, step=1, limit=18
    $region2: #{tpu_custom_call.1} parent=1 // loop_pre_header
      _
    $region3: #{tpu_custom_call.1} parent=1 // loop_header
      %s28 = sphi 0, %s32
      %p29 = scmp.ge.s32.totalorder %s28, 18
      %s35 = sphi 0, %s54
      %s36 = sphi 0, %s50
      %s37 = sphi 0, %s46
      %s38 = sphi 0, %s35
      %s39 = sphi 0, %s36
      %s40 = sphi 0, %s37
      %s41 = sphi 0, %s38
      %s42 = sphi 0, %s39
      %s43 = sphi 0, %s40
      %s59 = sphi 0, %s61
      %s62 = sphi 0, %s59
      %s63 = sphi 0, %s62
      %s79 = sphi 0, %s63
      %s85 = sphi 0, %s87
      %s88 = sphi 0, %s85
      %s89 = sphi 0, %s88
      %s105 = sphi 0, %s89
      %s111 = sphi 0, %s113
      %s114 = sphi 0, %s111
      %s115 = sphi 0, %s114
      %s131 = sphi 0, %s115
      %s137 = sphi 0, %s139
      %s140 = sphi 0, %s137
      %s141 = sphi 0, %s140
      %s157 = sphi 0, %s141
      %s167 = sphi 0, %s169
      %s170 = sphi 0, %s167
      %s171 = sphi 0, %s170
      %s187 = sphi 0, %s171
      %s197 = sphi 0, %s199
      %s200 = sphi 0, %s197
      %s201 = sphi 0, %s200
      %s217 = sphi 0, %s201
      %s227 = sphi 0, %s229
      %s230 = sphi 0, %s227
      %s231 = sphi 0, %s230
      %s247 = sphi 0, %s231
    $region4: #{tpu_custom_call.1} parent=1 // loop_header_branch
      %31 = sbr.rel (%p29) target = $region8
    $region5: #{tpu_custom_call.1} parent=1 // loop_body
      %s33 = ssub.s32 %s28, 1
      %s34 = ssub.s32 %s28, 2
      %s44 = sadd.s32 1, %s37
      %p45 = scmp.ge.s32.totalorder %s44, 4
      %s46 = scalar_select %p45, 0, %s44
      %s47 = sadd.s32 1, %s36
      %s48 = scalar_select %p45, %s47, %s36
      %p49 = scmp.ge.s32.totalorder %s48, 2
      %s50 = scalar_select %p49, 0, %s48
      %s51 = sadd.s32 1, %s35
      %s52 = scalar_select %p49, %s51, %s35
      %p53 = scmp.ge.s32.totalorder %s52, 2
      %s54 = scalar_select %p53, 0, %s52
      %s55 = ssub.s32 %s35, %s54
      %s56 = ssub.s32 %s37, %s46
      %s57 = sor.u32 %s55, %s56
      %p58 = scmp.eq.s32.totalorder %s57, 0
      %s60 = sadd.s32 %s59, 1
      %s61 = scalar_select %p58, %s59, %s60
      %p64 = pneg %p58
      %p65 = scmp.eq.s32.totalorder %s28, 15
      %p66 = por %p64, %p65
      %p67 = scmp.ne.s32.totalorder %s59, %s62
      %p68 = scmp.eq.s32.totalorder %s28, 0
      %p69 = por %p67, %p68
      %p70 = scmp.ne.s32.totalorder %s59, %s62
      %p71 = scmp.eq.s32.totalorder %s33, 15
      %p72 = por %p70, %p71
      %p73 = scmp.ne.s32.totalorder %s62, %s63
      %p74 = scmp.eq.s32.totalorder %s33, 0
      %p75 = por %p73, %p74
      %p76 = scmp.ne.s32.totalorder %s62, %s63
      %p77 = scmp.eq.s32.totalorder %s34, 15
      %p78 = por %p76, %p77
      %p80 = scmp.ne.s32.totalorder %s63, %s79
      %p81 = scmp.eq.s32.totalorder %s34, 0
      %p82 = por %p80, %p81
      %s83 = ssub.s32 %s36, %s50
      %p84 = scmp.eq.s32.totalorder %s83, 0
      %s86 = sadd.s32 %s85, 1
      %s87 = scalar_select %p84, %s85, %s86
      %p90 = pneg %p84
      %p91 = scmp.eq.s32.totalorder %s28, 15
      %p92 = por %p90, %p91
      %p93 = scmp.ne.s32.totalorder %s85, %s88
      %p94 = scmp.eq.s32.totalorder %s28, 0
      %p95 = por %p93, %p94
      %p96 = scmp.ne.s32.totalorder %s85, %s88
      %p97 = scmp.eq.s32.totalorder %s33, 15
      %p98 = por %p96, %p97
      %p99 = scmp.ne.s32.totalorder %s88, %s89
      %p100 = scmp.eq.s32.totalorder %s33, 0
      %p101 = por %p99, %p100
      %p102 = scmp.ne.s32.totalorder %s88, %s89
      %p103 = scmp.eq.s32.totalorder %s34, 15
      %p104 = por %p102, %p103
      %p106 = scmp.ne.s32.totalorder %s89, %s105
      %p107 = scmp.eq.s32.totalorder %s34, 0
      %p108 = por %p106, %p107
      %s109 = ssub.s32 %s37, %s46
      %p110 = scmp.eq.s32.totalorder %s109, 0
      %s112 = sadd.s32 %s111, 1
      %s113 = scalar_select %p110, %s111, %s112
      %p116 = pneg %p110
      %p117 = scmp.eq.s32.totalorder %s28, 15
      %p118 = por %p116, %p117
      %p119 = scmp.ne.s32.totalorder %s111, %s114
      %p120 = scmp.eq.s32.totalorder %s28, 0
      %p121 = por %p119, %p120
      %p122 = scmp.ne.s32.totalorder %s111, %s114
      %p123 = scmp.eq.s32.totalorder %s33, 15
      %p124 = por %p122, %p123
      %p125 = scmp.ne.s32.totalorder %s114, %s115
      %p126 = scmp.eq.s32.totalorder %s33, 0
      %p127 = por %p125, %p126
      %p128 = scmp.ne.s32.totalorder %s114, %s115
      %p129 = scmp.eq.s32.totalorder %s34, 15
      %p130 = por %p128, %p129
      %p132 = scmp.ne.s32.totalorder %s115, %s131
      %p133 = scmp.eq.s32.totalorder %s34, 0
      %p134 = por %p132, %p133
      %s135 = ssub.s32 %s37, %s46
      %p136 = scmp.eq.s32.totalorder %s135, 0
      %s138 = sadd.s32 %s137, 1
      %s139 = scalar_select %p136, %s137, %s138
      %p142 = pneg %p136
      %p143 = scmp.eq.s32.totalorder %s28, 15
      %p144 = por %p142, %p143
      %p145 = scmp.ne.s32.totalorder %s137, %s140
      %p146 = scmp.eq.s32.totalorder %s28, 0
      %p147 = por %p145, %p146
      %p148 = scmp.ne.s32.totalorder %s137, %s140
      %p149 = scmp.eq.s32.totalorder %s33, 15
      %p150 = por %p148, %p149
      %p151 = scmp.ne.s32.totalorder %s140, %s141
      %p152 = scmp.eq.s32.totalorder %s33, 0
      %p153 = por %p151, %p152
      %p154 = scmp.ne.s32.totalorder %s140, %s141
      %p155 = scmp.eq.s32.totalorder %s34, 15
      %p156 = por %p154, %p155
      %p158 = scmp.ne.s32.totalorder %s141, %s157
      %p159 = scmp.eq.s32.totalorder %s34, 0
      %p160 = por %p158, %p159
      %s161 = ssub.s32 %s35, %s54
      %s162 = ssub.s32 %s36, %s50
      %s163 = sor.u32 %s161, %s162
      %s164 = ssub.s32 %s37, %s46
      %s165 = sor.u32 %s163, %s164
      %p166 = scmp.eq.s32.totalorder %s165, 0
      %s168 = sadd.s32 %s167, 1
      %s169 = scalar_select %p166, %s167, %s168
      %p172 = pneg %p166
      %p173 = scmp.eq.s32.totalorder %s28, 15
      %p174 = por %p172, %p173
      %p175 = scmp.ne.s32.totalorder %s167, %s170
      %p176 = scmp.eq.s32.totalorder %s28, 0
      %p177 = por %p175, %p176
      %p178 = scmp.ne.s32.totalorder %s167, %s170
      %p179 = scmp.eq.s32.totalorder %s33, 15
      %p180 = por %p178, %p179
      %p181 = scmp.ne.s32.totalorder %s170, %s171
      %p182 = scmp.eq.s32.totalorder %s33, 0
      %p183 = por %p181, %p182
      %p184 = scmp.ne.s32.totalorder %s170, %s171
      %p185 = scmp.eq.s32.totalorder %s34, 15
      %p186 = por %p184, %p185
      %p188 = scmp.ne.s32.totalorder %s171, %s187
      %p189 = scmp.eq.s32.totalorder %s34, 0
      %p190 = por %p188, %p189
      %s191 = ssub.s32 %s35, %s54
      %s192 = ssub.s32 %s36, %s50
      %s193 = sor.u32 %s191, %s192
      %s194 = ssub.s32 %s37, %s46
      %s195 = sor.u32 %s193, %s194
      %p196 = scmp.eq.s32.totalorder %s195, 0
      %s198 = sadd.s32 %s197, 1
      %s199 = scalar_select %p196, %s197, %s198
      %p202 = pneg %p196
      %p203 = scmp.eq.s32.totalorder %s28, 15
      %p204 = por %p202, %p203
      %p205 = scmp.ne.s32.totalorder %s197, %s200
      %p206 = scmp.eq.s32.totalorder %s28, 0
      %p207 = por %p205, %p206
      %p208 = scmp.ne.s32.totalorder %s197, %s200
      %p209 = scmp.eq.s32.totalorder %s33, 15
      %p210 = por %p208, %p209
      %p211 = scmp.ne.s32.totalorder %s200, %s201
      %p212 = scmp.eq.s32.totalorder %s33, 0
      %p213 = por %p211, %p212
      %p214 = scmp.ne.s32.totalorder %s200, %s201
      %p215 = scmp.eq.s32.totalorder %s34, 15
      %p216 = por %p214, %p215
      %p218 = scmp.ne.s32.totalorder %s201, %s217
      %p219 = scmp.eq.s32.totalorder %s34, 0
      %p220 = por %p218, %p219
      %s221 = ssub.s32 %s35, %s54
      %s222 = ssub.s32 %s36, %s50
      %s223 = sor.u32 %s221, %s222
      %s224 = ssub.s32 %s37, %s46
      %s225 = sor.u32 %s223, %s224
      %p226 = scmp.eq.s32.totalorder %s225, 0
      %s228 = sadd.s32 %s227, 1
      %s229 = scalar_select %p226, %s227, %s228
      %p232 = pneg %p226
      %p233 = scmp.eq.s32.totalorder %s28, 15
      %p234 = por %p232, %p233
      %p235 = scmp.ne.s32.totalorder %s227, %s230
      %p236 = scmp.eq.s32.totalorder %s28, 0
      %p237 = por %p235, %p236
      %p238 = scmp.ne.s32.totalorder %s227, %s230
      %p239 = scmp.eq.s32.totalorder %s33, 15
      %p240 = por %p238, %p239
      %p241 = scmp.ne.s32.totalorder %s230, %s231
      %p242 = scmp.eq.s32.totalorder %s33, 0
      %p243 = por %p241, %p242
      %p244 = scmp.ne.s32.totalorder %s230, %s231
      %p245 = scmp.eq.s32.totalorder %s34, 15
      %p246 = por %p244, %p245
      %p248 = scmp.ne.s32.totalorder %s231, %s247
      %p249 = scmp.eq.s32.totalorder %s34, 0
      %p250 = por %p248, %p249
      %p251 = scmp.le.s32.totalorder 1, %s28
      %p252 = scmp.lt.s32.totalorder %s28, 17
      %p253 = pnand %p251, %p252
      %p254 = pneg %p253
      // Predicated region
      $region9: #{tpu_custom_call.1} parent=5 // pred_check
        _
      $region10: #{tpu_custom_call.1} parent=5 // pred_check_branch
        %256 = sbr.rel (%p253) target = $region12
      $region11: #{tpu_custom_call.1} parent=5 // pred_region
        %s257 = ssub.s32 %s28, 1
      $region12: #{tpu_custom_call.1} parent=5 // pred_fallthru
        _
      %p258 = scmp.lt.s32.totalorder %s28, 16
      // Predicated region
      $region13: #{tpu_custom_call.1} parent=5 // pred_check
        %p259 = pneg %p258
      $region14: #{tpu_custom_call.1} parent=5 // pred_check_branch
        %261 = sbr.rel (%p259) target = $region16
      $region15: #{tpu_custom_call.1} parent=5 // pred_region
        // Predicated region
        $region17: #{tpu_custom_call.1} parent=15 // pred_check
          %p262 = pneg %p69
        $region18: #{tpu_custom_call.1} parent=15 // pred_check_branch
          %264 = sbr.rel (%p262) target = $region20
        $region19: #{tpu_custom_call.1} parent=15 // pred_region
          %s265 = sand.u32 %s59, 1
          %s266 = scalar_lea.sflag [#allocation3], %s265
          %s267 = sand.u32 %s59, 1
          %s268 = smul.addr %s267, 64
          %s269 = scalar_lea.vmem [#allocation2], %s268
          %s270 = smul.u32 4, %s37
          %272 = vsyncadd %s266, 0
          %s273 = smul.addr %s270, 4
          %s274 = smul.addr %s35, 64
          %s275 = sadd.s32 %s273, %s274
          %s276 = smul.addr %s275, 4
          %s277 = scalar_lea.hbm %s0, %s276
          %s278 = sshll.u32 %s277, 4
          %s279 = int_to_ptr.hbm [resolvable:$true] %s278
          %s280 = sshll.u32 %s269, 4
          %s281 = int_to_ptr.vmem [resolvable:$true] %s280
          %286 = dma.hbm_to_vmem [thread:$0]  %s279, 1024, %s281, %s266, 256, 256, 16
        $region20: #{tpu_custom_call.1} parent=15 // pred_fallthru
          _
        // Predicated region
        $region21: #{tpu_custom_call.1} parent=15 // pred_check
          %p287 = pneg %p95
        $region22: #{tpu_custom_call.1} parent=15 // pred_check_branch
          %289 = sbr.rel (%p287) target = $region24
        $region23: #{tpu_custom_call.1} parent=15 // pred_region
          %s290 = sand.u32 %s28, 1
          %s291 = scalar_lea.sflag [#allocation6], %s290
          %s292 = sand.u32 %s85, 1
          %s293 = smul.addr %s292, 1024
          %s294 = scalar_lea.vmem [#allocation5], %s293
          %s295 = smul.u32 4, %s36
          %297 = vsyncadd %s291, 0
          %s298 = smul.addr %s295, 4
          %s299 = scalar_lea.hbm %s1, %s298
          %s300 = sshll.u32 %s299, 4
          %s301 = int_to_ptr.hbm [resolvable:$true] %s300
          %s302 = sshll.u32 %s294, 4
          %s303 = int_to_ptr.vmem [resolvable:$true] %s302
          %308 = dma.hbm_to_vmem [thread:$0]  %s301, 16384, %s303, %s291, 512, 256, 16
        $region24: #{tpu_custom_call.1} parent=15 // pred_fallthru
          _
        // Predicated region
        $region25: #{tpu_custom_call.1} parent=15 // pred_check
          %p309 = pneg %p121
        $region26: #{tpu_custom_call.1} parent=15 // pred_check_branch
          %311 = sbr.rel (%p309) target = $region28
        $region27: #{tpu_custom_call.1} parent=15 // pred_region
          %s312 = sand.u32 %s28, 1
          %s313 = scalar_lea.sflag [#allocation6], %s312
          %s314 = sand.u32 %s111, 1
          %s315 = smul.addr %s314, 32
          %s316 = scalar_lea.vmem [#allocation7], %s315
          %s317 = smul.u32 4, %s37
          %319 = vsyncadd %s313, 0
          %s320 = smul.addr %s317, 8
          %s321 = scalar_lea.hbm %s2, %s320
          %s322 = sshll.u32 %s321, 4
          %s323 = int_to_ptr.hbm [resolvable:$true] %s322
          %s324 = sshll.u32 %s316, 4
          %s325 = int_to_ptr.vmem [resolvable:$true] %s324
          %330 = dma.hbm_to_vmem [thread:$0]  %s323, 512, %s325, %s313, 128, 128, 8
        $region28: #{tpu_custom_call.1} parent=15 // pred_fallthru
          _
        // Predicated region
        $region29: #{tpu_custom_call.1} parent=15 // pred_check
          %p331 = pneg %p147
        $region30: #{tpu_custom_call.1} parent=15 // pred_check_branch
          %333 = sbr.rel (%p331) target = $region32
        $region31: #{tpu_custom_call.1} parent=15 // pred_region
          %s334 = sand.u32 %s137, 1
          %s335 = scalar_lea.sflag [#allocation9], %s334
          %s336 = sand.u32 %s137, 1
          %s337 = smul.addr %s336, 32
          %s338 = scalar_lea.vmem [#allocation8], %s337
          %s339 = smul.u32 4, %s37
          %341 = vsyncadd %s335, 0
          %s342 = smul.addr %s339, 8
          %s343 = scalar_lea.hbm %s3, %s342
          %s344 = sshll.u32 %s343, 4
          %s345 = int_to_ptr.hbm [resolvable:$true] %s344
          %s346 = sshll.u32 %s338, 4
          %s347 = int_to_ptr.vmem [resolvable:$true] %s346
          %352 = dma.hbm_to_vmem [thread:$0]  %s345, 512, %s347, %s335, 128, 128, 8
        $region32: #{tpu_custom_call.1} parent=15 // pred_fallthru
          _
      $region16: #{tpu_custom_call.1} parent=5 // pred_fallthru
        _
      %p353 = scmp.le.s32.totalorder 1, %s28
      %p354 = scmp.lt.s32.totalorder %s28, 17
      %p355 = pnand %p353, %p354
      %p356 = pneg %p355
      // Predicated region
      $region33: #{tpu_custom_call.1} parent=5 // pred_check
        _
      $region34: #{tpu_custom_call.1} parent=5 // pred_check_branch
        %358 = sbr.rel (%p355) target = $region36
      $region35: #{tpu_custom_call.1} parent=5 // pred_region
        %s359 = ssub.s32 %s28, 1
        %s360 = sand.u32 %s62, 1
        %s361 = scalar_lea.sflag [#allocation3], %s360
        %s362 = sand.u32 %s62, 1
        %s363 = smul.addr %s362, 64
        %s364 = scalar_lea.vmem [#allocation2], %s363
        // Predicated region
        $region37: #{tpu_custom_call.1} parent=35 // pred_check
          %p365 = pneg %p75
        $region38: #{tpu_custom_call.1} parent=35 // pred_check_branch
          %367 = sbr.rel (%p365) target = $region40
        $region39: #{tpu_custom_call.1} parent=35 // pred_region
          %369 = dma.done %s361, 1024
        $region40: #{tpu_custom_call.1} parent=35 // pred_fallthru
          _
        %s370 = sand.u32 %s33, 1
        %s371 = scalar_lea.sflag [#allocation6], %s370
        %s372 = sand.u32 %s88, 1
        %s373 = smul.addr %s372, 1024
        %s374 = scalar_lea.vmem [#allocation5], %s373
        // Predicated region
        $region41: #{tpu_custom_call.1} parent=35 // pred_check
          %p375 = pneg %p101
        $region42: #{tpu_custom_call.1} parent=35 // pred_check_branch
          %377 = sbr.rel (%p375) target = $region44
        $region43: #{tpu_custom_call.1} parent=35 // pred_region
          %379 = dma.done %s371, 16384
        $region44: #{tpu_custom_call.1} parent=35 // pred_fallthru
          _
        %s380 = sand.u32 %s33, 1
        %s381 = scalar_lea.sflag [#allocation6], %s380
        %s382 = sand.u32 %s114, 1
        %s383 = smul.addr %s382, 32
        %s384 = scalar_lea.vmem [#allocation7], %s383
        // Predicated region
        $region45: #{tpu_custom_call.1} parent=35 // pred_check
          %p385 = pneg %p127
        $region46: #{tpu_custom_call.1} parent=35 // pred_check_branch
          %387 = sbr.rel (%p385) target = $region48
        $region47: #{tpu_custom_call.1} parent=35 // pred_region
          %389 = dma.done %s381, 512
        $region48: #{tpu_custom_call.1} parent=35 // pred_fallthru
          _
        %s390 = sand.u32 %s140, 1
        %s391 = scalar_lea.sflag [#allocation9], %s390
        %s392 = sand.u32 %s140, 1
        %s393 = smul.addr %s392, 32
        %s394 = scalar_lea.vmem [#allocation8], %s393
        // Predicated region
        $region49: #{tpu_custom_call.1} parent=35 // pred_check
          %p395 = pneg %p153
        $region50: #{tpu_custom_call.1} parent=35 // pred_check_branch
          %397 = sbr.rel (%p395) target = $region52
        $region51: #{tpu_custom_call.1} parent=35 // pred_region
          %399 = dma.done %s391, 512
        $region52: #{tpu_custom_call.1} parent=35 // pred_fallthru
          _
        %s400 = sand.u32 %s62, 1
        %s401 = scalar_lea.sflag [#allocation3], %s400
        %s402 = sand.u32 %s62, 1
        %s403 = smul.addr %s402, 64
        %s404 = scalar_lea.vmem [#allocation2], %s403
        %p405 = pneg %p75
        %p406 = pneg %p72
        %s407 = sand.u32 %s33, 1
        %s408 = scalar_lea.sflag [#allocation6], %s407
        %s409 = sand.u32 %s88, 1
        %s410 = smul.addr %s409, 1024
        %s411 = scalar_lea.vmem [#allocation5], %s410
        %p412 = pneg %p101
        %p413 = pneg %p98
        %s414 = sand.u32 %s33, 1
        %s415 = scalar_lea.sflag [#allocation6], %s414
        %s416 = sand.u32 %s114, 1
        %s417 = smul.addr %s416, 32
        %s418 = scalar_lea.vmem [#allocation7], %s417
        %p419 = pneg %p127
        %p420 = pneg %p124
        %s421 = sand.u32 %s140, 1
        %s422 = scalar_lea.sflag [#allocation9], %s421
        %s423 = sand.u32 %s140, 1
        %s424 = smul.addr %s423, 32
        %s425 = scalar_lea.vmem [#allocation8], %s424
        %p426 = pneg %p153
        %p427 = pneg %p150
        %p428 = pneg %p183
        %p429 = pneg %p180
        %s430 = sand.u32 %s170, 1
        %s431 = scalar_lea.sflag [#allocation4], %s430
        %s432 = sand.u32 %s170, 1
        %s433 = smul.addr %s432, 32
        %s434 = scalar_lea.vmem [#allocation10], %s433
        %p435 = pneg %p213
        %p436 = pneg %p210
        %s437 = sand.u32 %s33, 1
        %s438 = scalar_lea.sflag [#allocation12], %s437
        %s439 = sand.u32 %s200, 1
        %s440 = smul.addr %s439, 16
        %s441 = scalar_lea.vmem [#allocation11], %s440
        %p442 = pneg %p243
        %p443 = pneg %p240
        %s444 = sand.u32 %s33, 1
        %s445 = scalar_lea.sflag [#allocation12], %s444
        %s446 = sand.u32 %s230, 1
        %s447 = smul.addr %s446, 16
        %s448 = scalar_lea.vmem [#allocation13], %s447
        %s449 = smul.u32 4, %s40
        %s450 = smul.u32 4, %s39
        %s451 = smul.u32 4, %s40
        %s452 = smul.u32 4, %s40
        %s453 = smul.u32 2, %s39
        %s454 = smul.u32 4, %s40
        %s455 = smul.u32 4, %s40
        %s456 = smul.u32 4, %s40
        %v457 = vld [vmem:[%s364] sm:$0xff]
        %v458 = vld [vmem:[%s364 + $0x8] sm:$0xff]
        %v459 = vld [vmem:[%s364 + $0x10] sm:$0xff]
        %v460 = vld [vmem:[%s364 + $0x18] sm:$0xff]
        %v461 = vld [vmem:[%s364 + $0x20] sm:$0xff]
        %v462 = vld [vmem:[%s364 + $0x28] sm:$0xff]
        %v463 = vld [vmem:[%s364 + $0x30] sm:$0xff]
        %v464 = vld [vmem:[%s364 + $0x38] sm:$0xff]
        %v465 = vld [vmem:[%s374] sm:$0xff]
        %v466 = vld [vmem:[%s374 + $0x8] sm:$0xff]
        %v467 = vld [vmem:[%s374 + $0x10] sm:$0xff]
        %v468 = vld [vmem:[%s374 + $0x18] sm:$0xff]
        %v469 = vld [vmem:[%s374 + $0x20] sm:$0xff]
        %v470 = vld [vmem:[%s374 + $0x28] sm:$0xff]
        %v471 = vld [vmem:[%s374 + $0x30] sm:$0xff]
        %v472 = vld [vmem:[%s374 + $0x38] sm:$0xff]
        %v473 = vld [vmem:[%s374 + $0x40] sm:$0xff]
        %v474 = vld [vmem:[%s374 + $0x48] sm:$0xff]
        %v475 = vld [vmem:[%s374 + $0x50] sm:$0xff]
        %v476 = vld [vmem:[%s374 + $0x58] sm:$0xff]
        %v477 = vld [vmem:[%s374 + $0x60] sm:$0xff]
        %v478 = vld [vmem:[%s374 + $0x68] sm:$0xff]
        %v479 = vld [vmem:[%s374 + $0x70] sm:$0xff]
        %v480 = vld [vmem:[%s374 + $0x78] sm:$0xff]
        %v481 = vld [vmem:[%s374 + $0x80] sm:$0xff]
        %v482 = vld [vmem:[%s374 + $0x88] sm:$0xff]
        %v483 = vld [vmem:[%s374 + $0x90] sm:$0xff]
        %v484 = vld [vmem:[%s374 + $0x98] sm:$0xff]
        %v485 = vld [vmem:[%s374 + $0xa0] sm:$0xff]
        %v486 = vld [vmem:[%s374 + $0xa8] sm:$0xff]
        %v487 = vld [vmem:[%s374 + $0xb0] sm:$0xff]
        %v488 = vld [vmem:[%s374 + $0xb8] sm:$0xff]
        %v489 = vld [vmem:[%s374 + $0xc0] sm:$0xff]
        %v490 = vld [vmem:[%s374 + $0xc8] sm:$0xff]
        %v491 = vld [vmem:[%s374 + $0xd0] sm:$0xff]
        %v492 = vld [vmem:[%s374 + $0xd8] sm:$0xff]
        %v493 = vld [vmem:[%s374 + $0xe0] sm:$0xff]
        %v494 = vld [vmem:[%s374 + $0xe8] sm:$0xff]
        %v495 = vld [vmem:[%s374 + $0xf0] sm:$0xff]
        %v496 = vld [vmem:[%s374 + $0xf8] sm:$0xff]
        %v497 = vld [vmem:[%s374 + $0x100] sm:$0xff]
        %v498 = vld [vmem:[%s374 + $0x108] sm:$0xff]
        %v499 = vld [vmem:[%s374 + $0x110] sm:$0xff]
        %v500 = vld [vmem:[%s374 + $0x118] sm:$0xff]
        %v501 = vld [vmem:[%s374 + $0x120] sm:$0xff]
        %v502 = vld [vmem:[%s374 + $0x128] sm:$0xff]
        %v503 = vld [vmem:[%s374 + $0x130] sm:$0xff]
        %v504 = vld [vmem:[%s374 + $0x138] sm:$0xff]
        %v505 = vld [vmem:[%s374 + $0x140] sm:$0xff]
        %v506 = vld [vmem:[%s374 + $0x148] sm:$0xff]
        %v507 = vld [vmem:[%s374 + $0x150] sm:$0xff]
        %v508 = vld [vmem:[%s374 + $0x158] sm:$0xff]
        %v509 = vld [vmem:[%s374 + $0x160] sm:$0xff]
        %v510 = vld [vmem:[%s374 + $0x168] sm:$0xff]
        %v511 = vld [vmem:[%s374 + $0x170] sm:$0xff]
        %v512 = vld [vmem:[%s374 + $0x178] sm:$0xff]
        %v513 = vld [vmem:[%s374 + $0x180] sm:$0xff]
        %v514 = vld [vmem:[%s374 + $0x188] sm:$0xff]
        %v515 = vld [vmem:[%s374 + $0x190] sm:$0xff]
        %v516 = vld [vmem:[%s374 + $0x198] sm:$0xff]
        %v517 = vld [vmem:[%s374 + $0x1a0] sm:$0xff]
        %v518 = vld [vmem:[%s374 + $0x1a8] sm:$0xff]
        %v519 = vld [vmem:[%s374 + $0x1b0] sm:$0xff]
        %v520 = vld [vmem:[%s374 + $0x1b8] sm:$0xff]
        %v521 = vld [vmem:[%s374 + $0x1c0] sm:$0xff]
        %v522 = vld [vmem:[%s374 + $0x1c8] sm:$0xff]
        %v523 = vld [vmem:[%s374 + $0x1d0] sm:$0xff]
        %v524 = vld [vmem:[%s374 + $0x1d8] sm:$0xff]
        %v525 = vld [vmem:[%s374 + $0x1e0] sm:$0xff]
        %v526 = vld [vmem:[%s374 + $0x1e8] sm:$0xff]
        %v527 = vld [vmem:[%s374 + $0x1f0] sm:$0xff]
        %v528 = vld [vmem:[%s374 + $0x1f8] sm:$0xff]
        %v529 = vld [vmem:[%s374 + $0x200] sm:$0xff]
        %v530 = vld [vmem:[%s374 + $0x208] sm:$0xff]
        %v531 = vld [vmem:[%s374 + $0x210] sm:$0xff]
        %v532 = vld [vmem:[%s374 + $0x218] sm:$0xff]
        %v533 = vld [vmem:[%s374 + $0x220] sm:$0xff]
        %v534 = vld [vmem:[%s374 + $0x228] sm:$0xff]
        %v535 = vld [vmem:[%s374 + $0x230] sm:$0xff]
        %v536 = vld [vmem:[%s374 + $0x238] sm:$0xff]
        %v537 = vld [vmem:[%s374 + $0x240] sm:$0xff]
        %v538 = vld [vmem:[%s374 + $0x248] sm:$0xff]
        %v539 = vld [vmem:[%s374 + $0x250] sm:$0xff]
        %v540 = vld [vmem:[%s374 + $0x258] sm:$0xff]
        %v541 = vld [vmem:[%s374 + $0x260] sm:$0xff]
        %v542 = vld [vmem:[%s374 + $0x268] sm:$0xff]
        %v543 = vld [vmem:[%s374 + $0x270] sm:$0xff]
        %v544 = vld [vmem:[%s374 + $0x278] sm:$0xff]
        %v545 = vld [vmem:[%s374 + $0x280] sm:$0xff]
        %v546 = vld [vmem:[%s374 + $0x288] sm:$0xff]
        %v547 = vld [vmem:[%s374 + $0x290] sm:$0xff]
        %v548 = vld [vmem:[%s374 + $0x298] sm:$0xff]
        %v549 = vld [vmem:[%s374 + $0x2a0] sm:$0xff]
        %v550 = vld [vmem:[%s374 + $0x2a8] sm:$0xff]
        %v551 = vld [vmem:[%s374 + $0x2b0] sm:$0xff]
        %v552 = vld [vmem:[%s374 + $0x2b8] sm:$0xff]
        %v553 = vld [vmem:[%s374 + $0x2c0] sm:$0xff]
        %v554 = vld [vmem:[%s374 + $0x2c8] sm:$0xff]
        %v555 = vld [vmem:[%s374 + $0x2d0] sm:$0xff]
        %v556 = vld [vmem:[%s374 + $0x2d8] sm:$0xff]
        %v557 = vld [vmem:[%s374 + $0x2e0] sm:$0xff]
        %v558 = vld [vmem:[%s374 + $0x2e8] sm:$0xff]
        %v559 = vld [vmem:[%s374 + $0x2f0] sm:$0xff]
        %v560 = vld [vmem:[%s374 + $0x2f8] sm:$0xff]
        %v561 = vld [vmem:[%s374 + $0x300] sm:$0xff]
        %v562 = vld [vmem:[%s374 + $0x308] sm:$0xff]
        %v563 = vld [vmem:[%s374 + $0x310] sm:$0xff]
        %v564 = vld [vmem:[%s374 + $0x318] sm:$0xff]
        %v565 = vld [vmem:[%s374 + $0x320] sm:$0xff]
        %v566 = vld [vmem:[%s374 + $0x328] sm:$0xff]
        %v567 = vld [vmem:[%s374 + $0x330] sm:$0xff]
        %v568 = vld [vmem:[%s374 + $0x338] sm:$0xff]
        %v569 = vld [vmem:[%s374 + $0x340] sm:$0xff]
        %v570 = vld [vmem:[%s374 + $0x348] sm:$0xff]
        %v571 = vld [vmem:[%s374 + $0x350] sm:$0xff]
        %v572 = vld [vmem:[%s374 + $0x358] sm:$0xff]
        %v573 = vld [vmem:[%s374 + $0x360] sm:$0xff]
        %v574 = vld [vmem:[%s374 + $0x368] sm:$0xff]
        %v575 = vld [vmem:[%s374 + $0x370] sm:$0xff]
        %v576 = vld [vmem:[%s374 + $0x378] sm:$0xff]
        %v577 = vld [vmem:[%s374 + $0x380] sm:$0xff]
        %v578 = vld [vmem:[%s374 + $0x388] sm:$0xff]
        %v579 = vld [vmem:[%s374 + $0x390] sm:$0xff]
        %v580 = vld [vmem:[%s374 + $0x398] sm:$0xff]
        %v581 = vld [vmem:[%s374 + $0x3a0] sm:$0xff]
        %v582 = vld [vmem:[%s374 + $0x3a8] sm:$0xff]
        %v583 = vld [vmem:[%s374 + $0x3b0] sm:$0xff]
        %v584 = vld [vmem:[%s374 + $0x3b8] sm:$0xff]
        %v585 = vld [vmem:[%s374 + $0x3c0] sm:$0xff]
        %v586 = vld [vmem:[%s374 + $0x3c8] sm:$0xff]
        %v587 = vld [vmem:[%s374 + $0x3d0] sm:$0xff]
        %v588 = vld [vmem:[%s374 + $0x3d8] sm:$0xff]
        %v589 = vld [vmem:[%s374 + $0x3e0] sm:$0xff]
        %v590 = vld [vmem:[%s374 + $0x3e8] sm:$0xff]
        %v591 = vld [vmem:[%s374 + $0x3f0] sm:$0xff]
        %v592 = vld [vmem:[%s374 + $0x3f8] sm:$0xff]
        %v601 = vunpack.c.l.b16 %v457
        %v602 = vunpack.c.h.b16 %v457
        %v603 = vunpack.c.l.b16 %v458
        %v604 = vunpack.c.h.b16 %v458
        %v605 = vunpack.c.l.b16 %v459
        %v606 = vunpack.c.h.b16 %v459
        %v607 = vunpack.c.l.b16 %v460
        %v608 = vunpack.c.h.b16 %v460
        %v609 = vunpack.c.l.b16 %v461
        %v610 = vunpack.c.h.b16 %v461
        %v611 = vunpack.c.l.b16 %v462
        %v612 = vunpack.c.h.b16 %v462
        %v613 = vunpack.c.l.b16 %v463
        %v614 = vunpack.c.h.b16 %v463
        %v615 = vunpack.c.l.b16 %v464
        %v616 = vunpack.c.h.b16 %v464
        %v617 = vpack.c.b16 %v605, %v601
        %v618 = vpack.c.b16 %v606, %v602
        %v619 = vpack.c.b16 %v607, %v603
        %v620 = vpack.c.b16 %v608, %v604
        %v621 = vpack.c.b16 %v613, %v609
        %v622 = vpack.c.b16 %v614, %v610
        %v623 = vpack.c.b16 %v615, %v611
        %v624 = vpack.c.b16 %v616, %v612
        %v761 = vunpack.c.l.b16 %v465
        %v762 = vunpack.c.h.b16 %v465
        %v763 = vunpack.c.l.b16 %v466
        %v764 = vunpack.c.h.b16 %v466
        %v765 = vunpack.c.l.b16 %v467
        %v766 = vunpack.c.h.b16 %v467
        %v767 = vunpack.c.l.b16 %v468
        %v768 = vunpack.c.h.b16 %v468
        %v769 = vunpack.c.l.b16 %v469
        %v770 = vunpack.c.h.b16 %v469
        %v771 = vunpack.c.l.b16 %v470
        %v772 = vunpack.c.h.b16 %v470
        %v773 = vunpack.c.l.b16 %v471
        %v774 = vunpack.c.h.b16 %v471
        %v775 = vunpack.c.l.b16 %v472
        %v776 = vunpack.c.h.b16 %v472
        %v777 = vunpack.c.l.b16 %v473
        %v778 = vunpack.c.h.b16 %v473
        %v779 = vunpack.c.l.b16 %v474
        %v780 = vunpack.c.h.b16 %v474
        %v781 = vunpack.c.l.b16 %v475
        %v782 = vunpack.c.h.b16 %v475
        %v783 = vunpack.c.l.b16 %v476
        %v784 = vunpack.c.h.b16 %v476
        %v785 = vunpack.c.l.b16 %v477
        %v786 = vunpack.c.h.b16 %v477
        %v787 = vunpack.c.l.b16 %v478
        %v788 = vunpack.c.h.b16 %v478
        %v789 = vunpack.c.l.b16 %v479
        %v790 = vunpack.c.h.b16 %v479
        %v791 = vunpack.c.l.b16 %v480
        %v792 = vunpack.c.h.b16 %v480
        %v793 = vunpack.c.l.b16 %v481
        %v794 = vunpack.c.h.b16 %v481
        %v795 = vunpack.c.l.b16 %v482
        %v796 = vunpack.c.h.b16 %v482
        %v797 = vunpack.c.l.b16 %v483
        %v798 = vunpack.c.h.b16 %v483
        %v799 = vunpack.c.l.b16 %v484
        %v800 = vunpack.c.h.b16 %v484
        %v801 = vunpack.c.l.b16 %v485
        %v802 = vunpack.c.h.b16 %v485
        %v803 = vunpack.c.l.b16 %v486
        %v804 = vunpack.c.h.b16 %v486
        %v805 = vunpack.c.l.b16 %v487
        %v806 = vunpack.c.h.b16 %v487
        %v807 = vunpack.c.l.b16 %v488
        %v808 = vunpack.c.h.b16 %v488
        %v809 = vunpack.c.l.b16 %v489
        %v810 = vunpack.c.h.b16 %v489
        %v811 = vunpack.c.l.b16 %v490
        %v812 = vunpack.c.h.b16 %v490
        %v813 = vunpack.c.l.b16 %v491
        %v814 = vunpack.c.h.b16 %v491
        %v815 = vunpack.c.l.b16 %v492
        %v816 = vunpack.c.h.b16 %v492
        %v817 = vunpack.c.l.b16 %v493
        %v818 = vunpack.c.h.b16 %v493
        %v819 = vunpack.c.l.b16 %v494
        %v820 = vunpack.c.h.b16 %v494
        %v821 = vunpack.c.l.b16 %v495
        %v822 = vunpack.c.h.b16 %v495
        %v823 = vunpack.c.l.b16 %v496
        %v824 = vunpack.c.h.b16 %v496
        %v825 = vunpack.c.l.b16 %v497
        %v826 = vunpack.c.h.b16 %v497
        %v827 = vunpack.c.l.b16 %v498
        %v828 = vunpack.c.h.b16 %v498
        %v829 = vunpack.c.l.b16 %v499
        %v830 = vunpack.c.h.b16 %v499
        %v831 = vunpack.c.l.b16 %v500
        %v832 = vunpack.c.h.b16 %v500
        %v833 = vunpack.c.l.b16 %v501
        %v834 = vunpack.c.h.b16 %v501
        %v835 = vunpack.c.l.b16 %v502
        %v836 = vunpack.c.h.b16 %v502
        %v837 = vunpack.c.l.b16 %v503
        %v838 = vunpack.c.h.b16 %v503
        %v839 = vunpack.c.l.b16 %v504
        %v840 = vunpack.c.h.b16 %v504
        %v841 = vunpack.c.l.b16 %v505
        %v842 = vunpack.c.h.b16 %v505
        %v843 = vunpack.c.l.b16 %v506
        %v844 = vunpack.c.h.b16 %v506
        %v845 = vunpack.c.l.b16 %v507
        %v846 = vunpack.c.h.b16 %v507
        %v847 = vunpack.c.l.b16 %v508
        %v848 = vunpack.c.h.b16 %v508
        %v849 = vunpack.c.l.b16 %v509
        %v850 = vunpack.c.h.b16 %v509
        %v851 = vunpack.c.l.b16 %v510
        %v852 = vunpack.c.h.b16 %v510
        %v853 = vunpack.c.l.b16 %v511
        %v854 = vunpack.c.h.b16 %v511
        %v855 = vunpack.c.l.b16 %v512
        %v856 = vunpack.c.h.b16 %v512
        %v857 = vunpack.c.l.b16 %v513
        %v858 = vunpack.c.h.b16 %v513
        %v859 = vunpack.c.l.b16 %v514
        %v860 = vunpack.c.h.b16 %v514
        %v861 = vunpack.c.l.b16 %v515
        %v862 = vunpack.c.h.b16 %v515
        %v863 = vunpack.c.l.b16 %v516
        %v864 = vunpack.c.h.b16 %v516
        %v865 = vunpack.c.l.b16 %v517
        %v866 = vunpack.c.h.b16 %v517
        %v867 = vunpack.c.l.b16 %v518
        %v868 = vunpack.c.h.b16 %v518
        %v869 = vunpack.c.l.b16 %v519
        %v870 = vunpack.c.h.b16 %v519
        %v871 = vunpack.c.l.b16 %v520
        %v872 = vunpack.c.h.b16 %v520
        %v873 = vunpack.c.l.b16 %v521
        %v874 = vunpack.c.h.b16 %v521
        %v875 = vunpack.c.l.b16 %v522
        %v876 = vunpack.c.h.b16 %v522
        %v877 = vunpack.c.l.b16 %v523
        %v878 = vunpack.c.h.b16 %v523
        %v879 = vunpack.c.l.b16 %v524
        %v880 = vunpack.c.h.b16 %v524
        %v881 = vunpack.c.l.b16 %v525
        %v882 = vunpack.c.h.b16 %v525
        %v883 = vunpack.c.l.b16 %v526
        %v884 = vunpack.c.h.b16 %v526
        %v885 = vunpack.c.l.b16 %v527
        %v886 = vunpack.c.h.b16 %v527
        %v887 = vunpack.c.l.b16 %v528
        %v888 = vunpack.c.h.b16 %v528
        %v889 = vunpack.c.l.b16 %v529
        %v890 = vunpack.c.h.b16 %v529
        %v891 = vunpack.c.l.b16 %v530
        %v892 = vunpack.c.h.b16 %v530
        %v893 = vunpack.c.l.b16 %v531
        %v894 = vunpack.c.h.b16 %v531
        %v895 = vunpack.c.l.b16 %v532
        %v896 = vunpack.c.h.b16 %v532
        %v897 = vunpack.c.l.b16 %v533
        %v898 = vunpack.c.h.b16 %v533
        %v899 = vunpack.c.l.b16 %v534
        %v900 = vunpack.c.h.b16 %v534
        %v901 = vunpack.c.l.b16 %v535
        %v902 = vunpack.c.h.b16 %v535
        %v903 = vunpack.c.l.b16 %v536
        %v904 = vunpack.c.h.b16 %v536
        %v905 = vunpack.c.l.b16 %v537
        %v906 = vunpack.c.h.b16 %v537
        %v907 = vunpack.c.l.b16 %v538
        %v908 = vunpack.c.h.b16 %v538
        %v909 = vunpack.c.l.b16 %v539
        %v910 = vunpack.c.h.b16 %v539
        %v911 = vunpack.c.l.b16 %v540
        %v912 = vunpack.c.h.b16 %v540
        %v913 = vunpack.c.l.b16 %v541
        %v914 = vunpack.c.h.b16 %v541
        %v915 = vunpack.c.l.b16 %v542
        %v916 = vunpack.c.h.b16 %v542
        %v917 = vunpack.c.l.b16 %v543
        %v918 = vunpack.c.h.b16 %v543
        %v919 = vunpack.c.l.b16 %v544
        %v920 = vunpack.c.h.b16 %v544
        %v921 = vunpack.c.l.b16 %v545
        %v922 = vunpack.c.h.b16 %v545
        %v923 = vunpack.c.l.b16 %v546
        %v924 = vunpack.c.h.b16 %v546
        %v925 = vunpack.c.l.b16 %v547
        %v926 = vunpack.c.h.b16 %v547
        %v927 = vunpack.c.l.b16 %v548
        %v928 = vunpack.c.h.b16 %v548
        %v929 = vunpack.c.l.b16 %v549
        %v930 = vunpack.c.h.b16 %v549
        %v931 = vunpack.c.l.b16 %v550
        %v932 = vunpack.c.h.b16 %v550
        %v933 = vunpack.c.l.b16 %v551
        %v934 = vunpack.c.h.b16 %v551
        %v935 = vunpack.c.l.b16 %v552
        %v936 = vunpack.c.h.b16 %v552
        %v937 = vunpack.c.l.b16 %v553
        %v938 = vunpack.c.h.b16 %v553
        %v939 = vunpack.c.l.b16 %v554
        %v940 = vunpack.c.h.b16 %v554
        %v941 = vunpack.c.l.b16 %v555
        %v942 = vunpack.c.h.b16 %v555
        %v943 = vunpack.c.l.b16 %v556
        %v944 = vunpack.c.h.b16 %v556
        %v945 = vunpack.c.l.b16 %v557
        %v946 = vunpack.c.h.b16 %v557
        %v947 = vunpack.c.l.b16 %v558
        %v948 = vunpack.c.h.b16 %v558
        %v949 = vunpack.c.l.b16 %v559
        %v950 = vunpack.c.h.b16 %v559
        %v951 = vunpack.c.l.b16 %v560
        %v952 = vunpack.c.h.b16 %v560
        %v953 = vunpack.c.l.b16 %v561
        %v954 = vunpack.c.h.b16 %v561
        %v955 = vunpack.c.l.b16 %v562
        %v956 = vunpack.c.h.b16 %v562
        %v957 = vunpack.c.l.b16 %v563
        %v958 = vunpack.c.h.b16 %v563
        %v959 = vunpack.c.l.b16 %v564
        %v960 = vunpack.c.h.b16 %v564
        %v961 = vunpack.c.l.b16 %v565
        %v962 = vunpack.c.h.b16 %v565
        %v963 = vunpack.c.l.b16 %v566
        %v964 = vunpack.c.h.b16 %v566
        %v965 = vunpack.c.l.b16 %v567
        %v966 = vunpack.c.h.b16 %v567
        %v967 = vunpack.c.l.b16 %v568
        %v968 = vunpack.c.h.b16 %v568
        %v969 = vunpack.c.l.b16 %v569
        %v970 = vunpack.c.h.b16 %v569
        %v971 = vunpack.c.l.b16 %v570
        %v972 = vunpack.c.h.b16 %v570
        %v973 = vunpack.c.l.b16 %v571
        %v974 = vunpack.c.h.b16 %v571
        %v975 = vunpack.c.l.b16 %v572
        %v976 = vunpack.c.h.b16 %v572
        %v977 = vunpack.c.l.b16 %v573
        %v978 = vunpack.c.h.b16 %v573
        %v979 = vunpack.c.l.b16 %v574
        %v980 = vunpack.c.h.b16 %v574
        %v981 = vunpack.c.l.b16 %v575
        %v982 = vunpack.c.h.b16 %v575
        %v983 = vunpack.c.l.b16 %v576
        %v984 = vunpack.c.h.b16 %v576
        %v985 = vunpack.c.l.b16 %v577
        %v986 = vunpack.c.h.b16 %v577
        %v987 = vunpack.c.l.b16 %v578
        %v988 = vunpack.c.h.b16 %v578
        %v989 = vunpack.c.l.b16 %v579
        %v990 = vunpack.c.h.b16 %v579
        %v991 = vunpack.c.l.b16 %v580
        %v992 = vunpack.c.h.b16 %v580
        %v993 = vunpack.c.l.b16 %v581
        %v994 = vunpack.c.h.b16 %v581
        %v995 = vunpack.c.l.b16 %v582
        %v996 = vunpack.c.h.b16 %v582
        %v997 = vunpack.c.l.b16 %v583
        %v998 = vunpack.c.h.b16 %v583
        %v999 = vunpack.c.l.b16 %v584
        %v1000 = vunpack.c.h.b16 %v584
        %v1001 = vunpack.c.l.b16 %v585
        %v1002 = vunpack.c.h.b16 %v585
        %v1003 = vunpack.c.l.b16 %v586
        %v1004 = vunpack.c.h.b16 %v586
        %v1005 = vunpack.c.l.b16 %v587
        %v1006 = vunpack.c.h.b16 %v587
        %v1007 = vunpack.c.l.b16 %v588
        %v1008 = vunpack.c.h.b16 %v588
        %v1009 = vunpack.c.l.b16 %v589
        %v1010 = vunpack.c.h.b16 %v589
        %v1011 = vunpack.c.l.b16 %v590
        %v1012 = vunpack.c.h.b16 %v590
        %v1013 = vunpack.c.l.b16 %v591
        %v1014 = vunpack.c.h.b16 %v591
        %v1015 = vunpack.c.l.b16 %v592
        %v1016 = vunpack.c.h.b16 %v592
        %v1017 = vpack.c.b16 %v765, %v761
        %v1018 = vpack.c.b16 %v766, %v762
        %v1019 = vpack.c.b16 %v767, %v763
        %v1020 = vpack.c.b16 %v768, %v764
        %v1021 = vpack.c.b16 %v773, %v769
        %v1022 = vpack.c.b16 %v774, %v770
        %v1023 = vpack.c.b16 %v775, %v771
        %v1024 = vpack.c.b16 %v776, %v772
        %v1025 = vpack.c.b16 %v781, %v777
        %v1026 = vpack.c.b16 %v782, %v778
        %v1027 = vpack.c.b16 %v783, %v779
        %v1028 = vpack.c.b16 %v784, %v780
        %v1029 = vpack.c.b16 %v789, %v785
        %v1030 = vpack.c.b16 %v790, %v786
        %v1031 = vpack.c.b16 %v791, %v787
        %v1032 = vpack.c.b16 %v792, %v788
        %v1033 = vpack.c.b16 %v797, %v793
        %v1034 = vpack.c.b16 %v798, %v794
        %v1035 = vpack.c.b16 %v799, %v795
        %v1036 = vpack.c.b16 %v800, %v796
        %v1037 = vpack.c.b16 %v805, %v801
        %v1038 = vpack.c.b16 %v806, %v802
        %v1039 = vpack.c.b16 %v807, %v803
        %v1040 = vpack.c.b16 %v808, %v804
        %v1041 = vpack.c.b16 %v813, %v809
        %v1042 = vpack.c.b16 %v814, %v810
        %v1043 = vpack.c.b16 %v815, %v811
        %v1044 = vpack.c.b16 %v816, %v812
        %v1045 = vpack.c.b16 %v821, %v817
        %v1046 = vpack.c.b16 %v822, %v818
        %v1047 = vpack.c.b16 %v823, %v819
        %v1048 = vpack.c.b16 %v824, %v820
        %v1049 = vpack.c.b16 %v829, %v825
        %v1050 = vpack.c.b16 %v830, %v826
        %v1051 = vpack.c.b16 %v831, %v827
        %v1052 = vpack.c.b16 %v832, %v828
        %v1053 = vpack.c.b16 %v837, %v833
        %v1054 = vpack.c.b16 %v838, %v834
        %v1055 = vpack.c.b16 %v839, %v835
        %v1056 = vpack.c.b16 %v840, %v836
        %v1057 = vpack.c.b16 %v845, %v841
        %v1058 = vpack.c.b16 %v846, %v842
        %v1059 = vpack.c.b16 %v847, %v843
        %v1060 = vpack.c.b16 %v848, %v844
        %v1061 = vpack.c.b16 %v853, %v849
        %v1062 = vpack.c.b16 %v854, %v850
        %v1063 = vpack.c.b16 %v855, %v851
        %v1064 = vpack.c.b16 %v856, %v852
        %v1065 = vpack.c.b16 %v861, %v857
        %v1066 = vpack.c.b16 %v862, %v858
        %v1067 = vpack.c.b16 %v863, %v859
        %v1068 = vpack.c.b16 %v864, %v860
        %v1069 = vpack.c.b16 %v869, %v865
        %v1070 = vpack.c.b16 %v870, %v866
        %v1071 = vpack.c.b16 %v871, %v867
        %v1072 = vpack.c.b16 %v872, %v868
        %v1073 = vpack.c.b16 %v877, %v873
        %v1074 = vpack.c.b16 %v878, %v874
        %v1075 = vpack.c.b16 %v879, %v875
        %v1076 = vpack.c.b16 %v880, %v876
        %v1077 = vpack.c.b16 %v885, %v881
        %v1078 = vpack.c.b16 %v886, %v882
        %v1079 = vpack.c.b16 %v887, %v883
        %v1080 = vpack.c.b16 %v888, %v884
        %v1081 = vpack.c.b16 %v893, %v889
        %v1082 = vpack.c.b16 %v894, %v890
        %v1083 = vpack.c.b16 %v895, %v891
        %v1084 = vpack.c.b16 %v896, %v892
        %v1085 = vpack.c.b16 %v901, %v897
        %v1086 = vpack.c.b16 %v902, %v898
        %v1087 = vpack.c.b16 %v903, %v899
        %v1088 = vpack.c.b16 %v904, %v900
        %v1089 = vpack.c.b16 %v909, %v905
        %v1090 = vpack.c.b16 %v910, %v906
        %v1091 = vpack.c.b16 %v911, %v907
        %v1092 = vpack.c.b16 %v912, %v908
        %v1093 = vpack.c.b16 %v917, %v913
        %v1094 = vpack.c.b16 %v918, %v914
        %v1095 = vpack.c.b16 %v919, %v915
        %v1096 = vpack.c.b16 %v920, %v916
        %v1097 = vpack.c.b16 %v925, %v921
        %v1098 = vpack.c.b16 %v926, %v922
        %v1099 = vpack.c.b16 %v927, %v923
        %v1100 = vpack.c.b16 %v928, %v924
        %v1101 = vpack.c.b16 %v933, %v929
        %v1102 = vpack.c.b16 %v934, %v930
        %v1103 = vpack.c.b16 %v935, %v931
        %v1104 = vpack.c.b16 %v936, %v932
        %v1105 = vpack.c.b16 %v941, %v937
        %v1106 = vpack.c.b16 %v942, %v938
        %v1107 = vpack.c.b16 %v943, %v939
        %v1108 = vpack.c.b16 %v944, %v940
        %v1109 = vpack.c.b16 %v949, %v945
        %v1110 = vpack.c.b16 %v950, %v946
        %v1111 = vpack.c.b16 %v951, %v947
        %v1112 = vpack.c.b16 %v952, %v948
        %v1113 = vpack.c.b16 %v957, %v953
        %v1114 = vpack.c.b16 %v958, %v954
        %v1115 = vpack.c.b16 %v959, %v955
        %v1116 = vpack.c.b16 %v960, %v956
        %v1117 = vpack.c.b16 %v965, %v961
        %v1118 = vpack.c.b16 %v966, %v962
        %v1119 = vpack.c.b16 %v967, %v963
        %v1120 = vpack.c.b16 %v968, %v964
        %v1121 = vpack.c.b16 %v973, %v969
        %v1122 = vpack.c.b16 %v974, %v970
        %v1123 = vpack.c.b16 %v975, %v971
        %v1124 = vpack.c.b16 %v976, %v972
        %v1125 = vpack.c.b16 %v981, %v977
        %v1126 = vpack.c.b16 %v982, %v978
        %v1127 = vpack.c.b16 %v983, %v979
        %v1128 = vpack.c.b16 %v984, %v980
        %v1129 = vpack.c.b16 %v989, %v985
        %v1130 = vpack.c.b16 %v990, %v986
        %v1131 = vpack.c.b16 %v991, %v987
        %v1132 = vpack.c.b16 %v992, %v988
        %v1133 = vpack.c.b16 %v997, %v993
        %v1134 = vpack.c.b16 %v998, %v994
        %v1135 = vpack.c.b16 %v999, %v995
        %v1136 = vpack.c.b16 %v1000, %v996
        %v1137 = vpack.c.b16 %v1005, %v1001
        %v1138 = vpack.c.b16 %v1006, %v1002
        %v1139 = vpack.c.b16 %v1007, %v1003
        %v1140 = vpack.c.b16 %v1008, %v1004
        %v1141 = vpack.c.b16 %v1013, %v1009
        %v1142 = vpack.c.b16 %v1014, %v1010
        %v1143 = vpack.c.b16 %v1015, %v1011
        %v1144 = vpack.c.b16 %v1016, %v1012
        %1273 = vmatpush.bf16.msra.mxu0 %v1045
        %1274 = vmatpush.bf16.msra.mxu0 %v1041
        %1275 = vmatpush.bf16.msra.mxu0 %v1037
        %1276 = vmatpush.bf16.msra.mxu0 %v1033
        %1277 = vmatpush.bf16.msra.mxu0 %v1029
        %1278 = vmatpush.bf16.msra.mxu0 %v1025
        %1279 = vmatpush.bf16.msra.mxu0 %v1021
        %1280 = vmatpush.bf16.msra.mxu0 %v1017
        %1281 = vmatmul.bf16.gmra.mxu0 %v617
        %v1282 = vpop.f32.mrf.mxu0
        %v1283 = vadd.f32 0.0, %v1282
        %v1284 = vpop.f32.mrf.mxu0
        %v1285 = vadd.f32 0.0, %v1284
        %1286 = vmatmul.bf16.gmra.mxu0 %v621
        %v1287 = vpop.f32.mrf.mxu0
        %v1288 = vadd.f32 0.0, %v1287
        %v1289 = vpop.f32.mrf.mxu0
        %v1290 = vadd.f32 0.0, %v1289
        %1291 = vdwg.mxu0
        %1292 = vmatpush.bf16.msra.mxu0 %v1077
        %1293 = vmatpush.bf16.msra.mxu0 %v1073
        %1294 = vmatpush.bf16.msra.mxu0 %v1069
        %1295 = vmatpush.bf16.msra.mxu0 %v1065
        %1296 = vmatpush.bf16.msra.mxu0 %v1061
        %1297 = vmatpush.bf16.msra.mxu0 %v1057
        %1298 = vmatpush.bf16.msra.mxu0 %v1053
        %1299 = vmatpush.bf16.msra.mxu0 %v1049
        %1300 = vmatmul.bf16.gmra.mxu0 %v618
        %v1301 = vpop.f32.mrf.mxu0
        %v1302 = vadd.f32 %v1283, %v1301
        %v1303 = vpop.f32.mrf.mxu0
        %v1304 = vadd.f32 %v1285, %v1303
        %1305 = vmatmul.bf16.gmra.mxu0 %v622
        %v1306 = vpop.f32.mrf.mxu0
        %v1307 = vadd.f32 %v1288, %v1306
        %v1308 = vpop.f32.mrf.mxu0
        %v1309 = vadd.f32 %v1290, %v1308
        %1310 = vdwg.mxu0
        %1311 = vmatpush.bf16.msra.mxu0 %v1109
        %1312 = vmatpush.bf16.msra.mxu0 %v1105
        %1313 = vmatpush.bf16.msra.mxu0 %v1101
        %1314 = vmatpush.bf16.msra.mxu0 %v1097
        %1315 = vmatpush.bf16.msra.mxu0 %v1093
        %1316 = vmatpush.bf16.msra.mxu0 %v1089
        %1317 = vmatpush.bf16.msra.mxu0 %v1085
        %1318 = vmatpush.bf16.msra.mxu0 %v1081
        %1319 = vmatmul.bf16.gmra.mxu0 %v619
        %v1320 = vpop.f32.mrf.mxu0
        %v1321 = vadd.f32 %v1302, %v1320
        %v1322 = vpop.f32.mrf.mxu0
        %v1323 = vadd.f32 %v1304, %v1322
        %1324 = vmatmul.bf16.gmra.mxu0 %v623
        %v1325 = vpop.f32.mrf.mxu0
        %v1326 = vadd.f32 %v1307, %v1325
        %v1327 = vpop.f32.mrf.mxu0
        %v1328 = vadd.f32 %v1309, %v1327
        %1329 = vdwg.mxu0
        %1330 = vmatpush.bf16.msra.mxu0 %v1141
        %1331 = vmatpush.bf16.msra.mxu0 %v1137
        %1332 = vmatpush.bf16.msra.mxu0 %v1133
        %1333 = vmatpush.bf16.msra.mxu0 %v1129
        %1334 = vmatpush.bf16.msra.mxu0 %v1125
        %1335 = vmatpush.bf16.msra.mxu0 %v1121
        %1336 = vmatpush.bf16.msra.mxu0 %v1117
        %1337 = vmatpush.bf16.msra.mxu0 %v1113
        %1338 = vmatmul.bf16.gmra.mxu0 %v620
        %v1339 = vpop.f32.mrf.mxu0
        %v1340 = vadd.f32 %v1321, %v1339
        %v1341 = vpop.f32.mrf.mxu0
        %v1342 = vadd.f32 %v1323, %v1341
        %1343 = vmatmul.bf16.gmra.mxu0 %v624
        %v1344 = vpop.f32.mrf.mxu0
        %v1345 = vadd.f32 %v1326, %v1344
        %v1346 = vpop.f32.mrf.mxu0
        %v1347 = vadd.f32 %v1328, %v1346
        %1348 = vdwg.mxu0
        %1349 = vmatpush.bf16.msra.mxu0 %v1046
        %1350 = vmatpush.bf16.msra.mxu0 %v1042
        %1351 = vmatpush.bf16.msra.mxu0 %v1038
        %1352 = vmatpush.bf16.msra.mxu0 %v1034
        %1353 = vmatpush.bf16.msra.mxu0 %v1030
        %1354 = vmatpush.bf16.msra.mxu0 %v1026
        %1355 = vmatpush.bf16.msra.mxu0 %v1022
        %1356 = vmatpush.bf16.msra.mxu0 %v1018
        %1357 = vmatmul.bf16.gmra.mxu0 %v617
        %v1358 = vpop.f32.mrf.mxu0
        %v1359 = vadd.f32 0.0, %v1358
        %v1360 = vpop.f32.mrf.mxu0
        %v1361 = vadd.f32 0.0, %v1360
        %1362 = vmatmul.bf16.gmra.mxu0 %v621
        %v1363 = vpop.f32.mrf.mxu0
        %v1364 = vadd.f32 0.0, %v1363
        %v1365 = vpop.f32.mrf.mxu0
        %v1366 = vadd.f32 0.0, %v1365
        %1367 = vdwg.mxu0
        %1368 = vmatpush.bf16.msra.mxu0 %v1078
        %1369 = vmatpush.bf16.msra.mxu0 %v1074
        %1370 = vmatpush.bf16.msra.mxu0 %v1070
        %1371 = vmatpush.bf16.msra.mxu0 %v1066
        %1372 = vmatpush.bf16.msra.mxu0 %v1062
        %1373 = vmatpush.bf16.msra.mxu0 %v1058
        %1374 = vmatpush.bf16.msra.mxu0 %v1054
        %1375 = vmatpush.bf16.msra.mxu0 %v1050
        %1376 = vmatmul.bf16.gmra.mxu0 %v618
        %v1377 = vpop.f32.mrf.mxu0
        %v1378 = vadd.f32 %v1359, %v1377
        %v1379 = vpop.f32.mrf.mxu0
        %v1380 = vadd.f32 %v1361, %v1379
        %1381 = vmatmul.bf16.gmra.mxu0 %v622
        %v1382 = vpop.f32.mrf.mxu0
        %v1383 = vadd.f32 %v1364, %v1382
        %v1384 = vpop.f32.mrf.mxu0
        %v1385 = vadd.f32 %v1366, %v1384
        %1386 = vdwg.mxu0
        %1387 = vmatpush.bf16.msra.mxu0 %v1110
        %1388 = vmatpush.bf16.msra.mxu0 %v1106
        %1389 = vmatpush.bf16.msra.mxu0 %v1102
        %1390 = vmatpush.bf16.msra.mxu0 %v1098
        %1391 = vmatpush.bf16.msra.mxu0 %v1094
        %1392 = vmatpush.bf16.msra.mxu0 %v1090
        %1393 = vmatpush.bf16.msra.mxu0 %v1086
        %1394 = vmatpush.bf16.msra.mxu0 %v1082
        %1395 = vmatmul.bf16.gmra.mxu0 %v619
        %v1396 = vpop.f32.mrf.mxu0
        %v1397 = vadd.f32 %v1378, %v1396
        %v1398 = vpop.f32.mrf.mxu0
        %v1399 = vadd.f32 %v1380, %v1398
        %1400 = vmatmul.bf16.gmra.mxu0 %v623
        %v1401 = vpop.f32.mrf.mxu0
        %v1402 = vadd.f32 %v1383, %v1401
        %v1403 = vpop.f32.mrf.mxu0
        %v1404 = vadd.f32 %v1385, %v1403
        %1405 = vdwg.mxu0
        %1406 = vmatpush.bf16.msra.mxu0 %v1142
        %1407 = vmatpush.bf16.msra.mxu0 %v1138
        %1408 = vmatpush.bf16.msra.mxu0 %v1134
        %1409 = vmatpush.bf16.msra.mxu0 %v1130
        %1410 = vmatpush.bf16.msra.mxu0 %v1126
        %1411 = vmatpush.bf16.msra.mxu0 %v1122
        %1412 = vmatpush.bf16.msra.mxu0 %v1118
        %1413 = vmatpush.bf16.msra.mxu0 %v1114
        %1414 = vmatmul.bf16.gmra.mxu0 %v620
        %v1415 = vpop.f32.mrf.mxu0
        %v1416 = vadd.f32 %v1397, %v1415
        %v1417 = vpop.f32.mrf.mxu0
        %v1418 = vadd.f32 %v1399, %v1417
        %1419 = vmatmul.bf16.gmra.mxu0 %v624
        %v1420 = vpop.f32.mrf.mxu0
        %v1421 = vadd.f32 %v1402, %v1420
        %v1422 = vpop.f32.mrf.mxu0
        %v1423 = vadd.f32 %v1404, %v1422
        %1424 = vdwg.mxu0
        %1425 = vmatpush.bf16.msra.mxu0 %v1047
        %1426 = vmatpush.bf16.msra.mxu0 %v1043
        %1427 = vmatpush.bf16.msra.mxu0 %v1039
        %1428 = vmatpush.bf16.msra.mxu0 %v1035
        %1429 = vmatpush.bf16.msra.mxu0 %v1031
        %1430 = vmatpush.bf16.msra.mxu0 %v1027
        %1431 = vmatpush.bf16.msra.mxu0 %v1023
        %1432 = vmatpush.bf16.msra.mxu0 %v1019
        %1433 = vmatmul.bf16.gmra.mxu0 %v617
        %v1434 = vpop.f32.mrf.mxu0
        %v1435 = vadd.f32 0.0, %v1434
        %v1436 = vpop.f32.mrf.mxu0
        %v1437 = vadd.f32 0.0, %v1436
        %1438 = vmatmul.bf16.gmra.mxu0 %v621
        %v1439 = vpop.f32.mrf.mxu0
        %v1440 = vadd.f32 0.0, %v1439
        %v1441 = vpop.f32.mrf.mxu0
        %v1442 = vadd.f32 0.0, %v1441
        %1443 = vdwg.mxu0
        %1444 = vmatpush.bf16.msra.mxu0 %v1079
        %1445 = vmatpush.bf16.msra.mxu0 %v1075
        %1446 = vmatpush.bf16.msra.mxu0 %v1071
        %1447 = vmatpush.bf16.msra.mxu0 %v1067
        %1448 = vmatpush.bf16.msra.mxu0 %v1063
        %1449 = vmatpush.bf16.msra.mxu0 %v1059
        %1450 = vmatpush.bf16.msra.mxu0 %v1055
        %1451 = vmatpush.bf16.msra.mxu0 %v1051
        %1452 = vmatmul.bf16.gmra.mxu0 %v618
        %v1453 = vpop.f32.mrf.mxu0
        %v1454 = vadd.f32 %v1435, %v1453
        %v1455 = vpop.f32.mrf.mxu0
        %v1456 = vadd.f32 %v1437, %v1455
        %1457 = vmatmul.bf16.gmra.mxu0 %v622
        %v1458 = vpop.f32.mrf.mxu0
        %v1459 = vadd.f32 %v1440, %v1458
        %v1460 = vpop.f32.mrf.mxu0
        %v1461 = vadd.f32 %v1442, %v1460
        %1462 = vdwg.mxu0
        %1463 = vmatpush.bf16.msra.mxu0 %v1111
        %1464 = vmatpush.bf16.msra.mxu0 %v1107
        %1465 = vmatpush.bf16.msra.mxu0 %v1103
        %1466 = vmatpush.bf16.msra.mxu0 %v1099
        %1467 = vmatpush.bf16.msra.mxu0 %v1095
        %1468 = vmatpush.bf16.msra.mxu0 %v1091
        %1469 = vmatpush.bf16.msra.mxu0 %v1087
        %1470 = vmatpush.bf16.msra.mxu0 %v1083
        %1471 = vmatmul.bf16.gmra.mxu0 %v619
        %v1472 = vpop.f32.mrf.mxu0
        %v1473 = vadd.f32 %v1454, %v1472
        %v1474 = vpop.f32.mrf.mxu0
        %v1475 = vadd.f32 %v1456, %v1474
        %1476 = vmatmul.bf16.gmra.mxu0 %v623
        %v1477 = vpop.f32.mrf.mxu0
        %v1478 = vadd.f32 %v1459, %v1477
        %v1479 = vpop.f32.mrf.mxu0
        %v1480 = vadd.f32 %v1461, %v1479
        %1481 = vdwg.mxu0
        %1482 = vmatpush.bf16.msra.mxu0 %v1143
        %1483 = vmatpush.bf16.msra.mxu0 %v1139
        %1484 = vmatpush.bf16.msra.mxu0 %v1135
        %1485 = vmatpush.bf16.msra.mxu0 %v1131
        %1486 = vmatpush.bf16.msra.mxu0 %v1127
        %1487 = vmatpush.bf16.msra.mxu0 %v1123
        %1488 = vmatpush.bf16.msra.mxu0 %v1119
        %1489 = vmatpush.bf16.msra.mxu0 %v1115
        %1490 = vmatmul.bf16.gmra.mxu0 %v620
        %v1491 = vpop.f32.mrf.mxu0
        %v1492 = vadd.f32 %v1473, %v1491
        %v1493 = vpop.f32.mrf.mxu0
        %v1494 = vadd.f32 %v1475, %v1493
        %1495 = vmatmul.bf16.gmra.mxu0 %v624
        %v1496 = vpop.f32.mrf.mxu0
        %v1497 = vadd.f32 %v1478, %v1496
        %v1498 = vpop.f32.mrf.mxu0
        %v1499 = vadd.f32 %v1480, %v1498
        %1500 = vdwg.mxu0
        %1501 = vmatpush.bf16.msra.mxu0 %v1048
        %1502 = vmatpush.bf16.msra.mxu0 %v1044
        %1503 = vmatpush.bf16.msra.mxu0 %v1040
        %1504 = vmatpush.bf16.msra.mxu0 %v1036
        %1505 = vmatpush.bf16.msra.mxu0 %v1032
        %1506 = vmatpush.bf16.msra.mxu0 %v1028
        %1507 = vmatpush.bf16.msra.mxu0 %v1024
        %1508 = vmatpush.bf16.msra.mxu0 %v1020
        %1509 = vmatmul.bf16.gmra.mxu0 %v617
        %v1510 = vpop.f32.mrf.mxu0
        %v1511 = vadd.f32 0.0, %v1510
        %v1512 = vpop.f32.mrf.mxu0
        %v1513 = vadd.f32 0.0, %v1512
        %1514 = vmatmul.bf16.gmra.mxu0 %v621
        %v1515 = vpop.f32.mrf.mxu0
        %v1516 = vadd.f32 0.0, %v1515
        %v1517 = vpop.f32.mrf.mxu0
        %v1518 = vadd.f32 0.0, %v1517
        %1519 = vdwg.mxu0
        %1520 = vmatpush.bf16.msra.mxu0 %v1080
        %1521 = vmatpush.bf16.msra.mxu0 %v1076
        %1522 = vmatpush.bf16.msra.mxu0 %v1072
        %1523 = vmatpush.bf16.msra.mxu0 %v1068
        %1524 = vmatpush.bf16.msra.mxu0 %v1064
        %1525 = vmatpush.bf16.msra.mxu0 %v1060
        %1526 = vmatpush.bf16.msra.mxu0 %v1056
        %1527 = vmatpush.bf16.msra.mxu0 %v1052
        %1528 = vmatmul.bf16.gmra.mxu0 %v618
        %v1529 = vpop.f32.mrf.mxu0
        %v1530 = vadd.f32 %v1511, %v1529
        %v1531 = vpop.f32.mrf.mxu0
        %v1532 = vadd.f32 %v1513, %v1531
        %1533 = vmatmul.bf16.gmra.mxu0 %v622
        %v1534 = vpop.f32.mrf.mxu0
        %v1535 = vadd.f32 %v1516, %v1534
        %v1536 = vpop.f32.mrf.mxu0
        %v1537 = vadd.f32 %v1518, %v1536
        %1538 = vdwg.mxu0
        %1539 = vmatpush.bf16.msra.mxu0 %v1112
        %1540 = vmatpush.bf16.msra.mxu0 %v1108
        %1541 = vmatpush.bf16.msra.mxu0 %v1104
        %1542 = vmatpush.bf16.msra.mxu0 %v1100
        %1543 = vmatpush.bf16.msra.mxu0 %v1096
        %1544 = vmatpush.bf16.msra.mxu0 %v1092
        %1545 = vmatpush.bf16.msra.mxu0 %v1088
        %1546 = vmatpush.bf16.msra.mxu0 %v1084
        %1547 = vmatmul.bf16.gmra.mxu0 %v619
        %v1548 = vpop.f32.mrf.mxu0
        %v1549 = vadd.f32 %v1530, %v1548
        %v1550 = vpop.f32.mrf.mxu0
        %v1551 = vadd.f32 %v1532, %v1550
        %1552 = vmatmul.bf16.gmra.mxu0 %v623
        %v1553 = vpop.f32.mrf.mxu0
        %v1554 = vadd.f32 %v1535, %v1553
        %v1555 = vpop.f32.mrf.mxu0
        %v1556 = vadd.f32 %v1537, %v1555
        %1557 = vdwg.mxu0
        %1558 = vmatpush.bf16.msra.mxu0 %v1144
        %1559 = vmatpush.bf16.msra.mxu0 %v1140
        %1560 = vmatpush.bf16.msra.mxu0 %v1136
        %1561 = vmatpush.bf16.msra.mxu0 %v1132
        %1562 = vmatpush.bf16.msra.mxu0 %v1128
        %1563 = vmatpush.bf16.msra.mxu0 %v1124
        %1564 = vmatpush.bf16.msra.mxu0 %v1120
        %1565 = vmatpush.bf16.msra.mxu0 %v1116
        %1566 = vmatmul.bf16.gmra.mxu0 %v620
        %v1567 = vpop.f32.mrf.mxu0
        %v1568 = vadd.f32 %v1549, %v1567
        %v1569 = vpop.f32.mrf.mxu0
        %v1570 = vadd.f32 %v1551, %v1569
        %1571 = vmatmul.bf16.gmra.mxu0 %v624
        %v1572 = vpop.f32.mrf.mxu0
        %v1573 = vadd.f32 %v1554, %v1572
        %v1574 = vpop.f32.mrf.mxu0
        %v1575 = vadd.f32 %v1556, %v1574
        %1576 = vdwg.mxu0
        %v1577 = vld [vmem:[%s384] sm:$0xff]
        %v1578 = vld [vmem:[%s384 + $0x8] sm:$0xff]
        %v1579 = vld [vmem:[%s384 + $0x10] sm:$0xff]
        %v1580 = vld [vmem:[%s384 + $0x18] sm:$0xff]
        %v1581 = vld [vmem:[%s394] sm:$0xff]
        %v1582 = vld [vmem:[%s394 + $0x8] sm:$0xff]
        %v1583 = vld [vmem:[%s394 + $0x10] sm:$0xff]
        %v1584 = vld [vmem:[%s394 + $0x18] sm:$0xff]
        %v1585 = vmul.f32 %v1340, %v1577
        %v1586 = vmul.f32 %v1342, %v1578
        %v1587 = vmul.f32 %v1345, %v1579
        %v1588 = vmul.f32 %v1347, %v1580
        %1589 = vrot.lane.b32.xlu0 %v1340, 64
        %v1590 = vpop.permute.xlu0 %1589
        %1591 = vrot.lane.b32.xlu0 %v1342, 64
        %v1592 = vpop.permute.xlu0 %1591
        %1593 = vrot.lane.b32.xlu0 %v1345, 64
        %v1594 = vpop.permute.xlu0 %1593
        %1595 = vrot.lane.b32.xlu0 %v1347, 64
        %v1596 = vpop.permute.xlu0 %1595
        %v1597 = vmul.f32 %v1590, %v1581
        %v1598 = vmul.f32 %v1592, %v1582
        %v1599 = vmul.f32 %v1594, %v1583
        %v1600 = vmul.f32 %v1596, %v1584
        %v1601 = vadd.f32 %v1585, %v1597
        %v1602 = vadd.f32 %v1586, %v1598
        %v1603 = vadd.f32 %v1587, %v1599
        %v1604 = vadd.f32 %v1588, %v1600
        %v1605 = vpack.c.bf16 %v1601, %v1601
        %v1606 = vpack.c.bf16 %v1602, %v1602
        %v1607 = vpack.c.bf16 %v1603, %v1603
        %v1608 = vpack.c.bf16 %v1604, %v1604
        %1609 = vst [vmem:[%s434] sm:$0xf] %v1605
        %1610 = vst [vmem:[%s434 + $0x4] sm:$0xf] %v1606
        %1611 = vst [vmem:[%s434 + $0x8] sm:$0xf] %v1607
        %1612 = vst [vmem:[%s434 + $0xc] sm:$0xf] %v1608
        %v1613 = vmul.f32 %v1416, %v1577
        %v1614 = vmul.f32 %v1418, %v1578
        %v1615 = vmul.f32 %v1421, %v1579
        %v1616 = vmul.f32 %v1423, %v1580
        %1617 = vrot.lane.b32.xlu0 %v1416, 64
        %v1618 = vpop.permute.xlu0 %1617
        %1619 = vrot.lane.b32.xlu0 %v1418, 64
        %v1620 = vpop.permute.xlu0 %1619
        %1621 = vrot.lane.b32.xlu0 %v1421, 64
        %v1622 = vpop.permute.xlu0 %1621
        %1623 = vrot.lane.b32.xlu0 %v1423, 64
        %v1624 = vpop.permute.xlu0 %1623
        %v1625 = vmul.f32 %v1618, %v1581
        %v1626 = vmul.f32 %v1620, %v1582
        %v1627 = vmul.f32 %v1622, %v1583
        %v1628 = vmul.f32 %v1624, %v1584
        %v1629 = vadd.f32 %v1613, %v1625
        %v1630 = vadd.f32 %v1614, %v1626
        %v1631 = vadd.f32 %v1615, %v1627
        %v1632 = vadd.f32 %v1616, %v1628
        %v1633 = vpack.c.bf16 %v1629, %v1629
        %v1634 = vpack.c.bf16 %v1630, %v1630
        %v1635 = vpack.c.bf16 %v1631, %v1631
        %v1636 = vpack.c.bf16 %v1632, %v1632
        %s1637 = scalar_lea.vmem %s434, 16 [#allocation10]
        %1638 = vst [vmem:[%s1637] sm:$0xf] %v1633
        %1639 = vst [vmem:[%s1637 + $0x4] sm:$0xf] %v1634
        %1640 = vst [vmem:[%s1637 + $0x8] sm:$0xf] %v1635
        %1641 = vst [vmem:[%s1637 + $0xc] sm:$0xf] %v1636
        %v1642 = vmul.f32 %v1492, %v1577
        %v1643 = vmul.f32 %v1494, %v1578
        %v1644 = vmul.f32 %v1497, %v1579
        %v1645 = vmul.f32 %v1499, %v1580
        %1646 = vrot.lane.b32.xlu0 %v1492, 64
        %v1647 = vpop.permute.xlu0 %1646
        %1648 = vrot.lane.b32.xlu0 %v1494, 64
        %v1649 = vpop.permute.xlu0 %1648
        %1650 = vrot.lane.b32.xlu0 %v1497, 64
        %v1651 = vpop.permute.xlu0 %1650
        %1652 = vrot.lane.b32.xlu0 %v1499, 64
        %v1653 = vpop.permute.xlu0 %1652
        %v1654 = vmul.f32 %v1647, %v1581
        %v1655 = vmul.f32 %v1649, %v1582
        %v1656 = vmul.f32 %v1651, %v1583
        %v1657 = vmul.f32 %v1653, %v1584
        %v1658 = vadd.f32 %v1642, %v1654
        %v1659 = vadd.f32 %v1643, %v1655
        %v1660 = vadd.f32 %v1644, %v1656
        %v1661 = vadd.f32 %v1645, %v1657
        %v1662 = vpack.c.bf16 %v1658, %v1658
        %v1663 = vpack.c.bf16 %v1659, %v1659
        %v1664 = vpack.c.bf16 %v1660, %v1660
        %v1665 = vpack.c.bf16 %v1661, %v1661
        %1666 = vst [vmem:[%s441] sm:$0xf] %v1662
        %1667 = vst [vmem:[%s441 + $0x4] sm:$0xf] %v1663
        %1668 = vst [vmem:[%s441 + $0x8] sm:$0xf] %v1664
        %1669 = vst [vmem:[%s441 + $0xc] sm:$0xf] %v1665
        %v1670 = vpack.c.bf16 %v1568, %v1568
        %v1671 = vpack.c.bf16 %v1570, %v1570
        %v1672 = vpack.c.bf16 %v1573, %v1573
        %v1673 = vpack.c.bf16 %v1575, %v1575
        %1674 = vst [vmem:[%s448] sm:$0xf] %v1670
        %1675 = vst [vmem:[%s448 + $0x4] sm:$0xf] %v1671
        %1676 = vst [vmem:[%s448 + $0x8] sm:$0xf] %v1672
        %1677 = vst [vmem:[%s448 + $0xc] sm:$0xf] %v1673
        %s1678 = sand.u32 %s170, 1
        %s1679 = scalar_lea.sflag [#allocation4], %s1678
        %s1680 = sand.u32 %s170, 1
        %s1681 = smul.addr %s1680, 32
        %s1682 = scalar_lea.vmem [#allocation10], %s1681
        %s1683 = sand.u32 %s33, 1
        %s1684 = scalar_lea.sflag [#allocation12], %s1683
        %s1685 = sand.u32 %s200, 1
        %s1686 = smul.addr %s1685, 16
        %s1687 = scalar_lea.vmem [#allocation11], %s1686
        %s1688 = sand.u32 %s33, 1
        %s1689 = scalar_lea.sflag [#allocation12], %s1688
        %s1690 = sand.u32 %s230, 1
        %s1691 = smul.addr %s1690, 16
        %s1692 = scalar_lea.vmem [#allocation13], %s1691
        // Predicated region
        $region53: #{tpu_custom_call.1} parent=35 // pred_check
          %p1693 = pneg %p180
        $region54: #{tpu_custom_call.1} parent=35 // pred_check_branch
          %1695 = sbr.rel (%p1693) target = $region56
        $region55: #{tpu_custom_call.1} parent=35 // pred_region
          #allocation15 [shape = 'u32[6]{0}', space=smem, size = 0x18, scoped, tag = 'DMA stride descriptor']
          %s1696 = smul.u32 2, %s39
          %s1697 = smul.u32 4, %s40
          %1699 = vsyncadd %s1679, 0
          %s1700 = smul.addr %s1696, 16
          %s1701 = sadd.s32 %s1697, %s1700
          %s1702 = smul.addr %s38, 64
          %s1703 = sadd.s32 %s1701, %s1702
          %s1704 = smul.addr %s1703, 4
          %s1705 = scalar_lea.hbm %s4, %s1704
          %s1707 = sshll.u32 1, 14
          %s1708 = sxor.u32 4294967295, %s1707
          %s1711 = sshll.u32 7, 18
          %s1712 = sxor.u32 4294967295, %s1711
          %s1713 = sand.u32 0, %s1712
          %s1715 = sor.u32 %s1713, 0
          %s1716 = sshll.u32 %s1682, 4
          %s1717 = int_to_ptr.vmem [resolvable:$true] %s1716
          %s1718 = sshll.u32 %s1705, 4
          %s1719 = int_to_ptr.hbm [resolvable:$true] %s1718
          %1725 = sst [smem:[#allocation15]] 256
          %s1726 = scalar_lea.smem [#allocation15], 1
          %1727 = sst [smem:[%s1726]] 1024
          %s1728 = scalar_lea.smem [#allocation15], 2
          %1729 = sst [smem:[%s1728]] 4
          %s1730 = scalar_lea.smem [#allocation15], 3
          %1731 = sst [smem:[%s1730]] 64
          %s1732 = scalar_lea.smem [#allocation15], 4
          %1733 = sst [smem:[%s1732]] 64
          %s1734 = scalar_lea.smem [#allocation15], 5
          %1735 = sst [smem:[%s1734]] 4
          %1737 = dma.general %s1717, 512, %s1719, %s1679, [#allocation14], [#allocation15], %s1715, 0
        $region56: #{tpu_custom_call.1} parent=35 // pred_fallthru
          _
        // Predicated region
        $region57: #{tpu_custom_call.1} parent=35 // pred_check
          %p1738 = pneg %p210
        $region58: #{tpu_custom_call.1} parent=35 // pred_check_branch
          %1740 = sbr.rel (%p1738) target = $region60
        $region59: #{tpu_custom_call.1} parent=35 // pred_region
          %s1741 = smul.u32 4, %s40
          %1743 = vsyncadd %s1684, 0
          %s1744 = smul.addr %s39, 16
          %s1745 = sadd.s32 %s1741, %s1744
          %s1746 = smul.addr %s38, 32
          %s1747 = sadd.s32 %s1745, %s1746
          %s1748 = smul.addr %s1747, 4
          %s1749 = scalar_lea.hbm %s5, %s1748
          %s1750 = sshll.u32 %s1687, 4
          %s1751 = int_to_ptr.vmem [resolvable:$true] %s1750
          %s1752 = sshll.u32 %s1749, 4
          %s1753 = int_to_ptr.hbm [resolvable:$true] %s1752
          %1758 = dma.vmem_to_hbm [thread:$0]  %s1751, 256, %s1753, %s1684, 64, 64, 4
        $region60: #{tpu_custom_call.1} parent=35 // pred_fallthru
          _
        // Predicated region
        $region61: #{tpu_custom_call.1} parent=35 // pred_check
          %p1759 = pneg %p240
        $region62: #{tpu_custom_call.1} parent=35 // pred_check_branch
          %1761 = sbr.rel (%p1759) target = $region64
        $region63: #{tpu_custom_call.1} parent=35 // pred_region
          %s1762 = smul.u32 4, %s40
          %1764 = vsyncadd %s1689, 0
          %s1765 = smul.addr %s39, 16
          %s1766 = sadd.s32 %s1762, %s1765
          %s1767 = smul.addr %s38, 32
          %s1768 = sadd.s32 %s1766, %s1767
          %s1769 = smul.addr %s1768, 4
          %s1770 = scalar_lea.hbm %s6, %s1769
          %s1771 = sshll.u32 %s1692, 4
          %s1772 = int_to_ptr.vmem [resolvable:$true] %s1771
          %s1773 = sshll.u32 %s1770, 4
          %s1774 = int_to_ptr.hbm [resolvable:$true] %s1773
          %1779 = dma.vmem_to_hbm [thread:$0]  %s1772, 256, %s1774, %s1689, 64, 64, 4
        $region64: #{tpu_custom_call.1} parent=35 // pred_fallthru
          _
      $region36: #{tpu_custom_call.1} parent=5 // pred_fallthru
        _
      %p1780 = scmp.le.s32.totalorder 2, %s28
      // Predicated region
      $region65: #{tpu_custom_call.1} parent=5 // pred_check
        %p1781 = pneg %p1780
      $region66: #{tpu_custom_call.1} parent=5 // pred_check_branch
        %1783 = sbr.rel (%p1781) target = $region68
      $region67: #{tpu_custom_call.1} parent=5 // pred_region
        %s1784 = ssub.s32 %s28, 2
        // Predicated region
        $region69: #{tpu_custom_call.1} parent=67 // pred_check
          %p1785 = pneg %p186
        $region70: #{tpu_custom_call.1} parent=67 // pred_check_branch
          %1787 = sbr.rel (%p1785) target = $region72
        $region71: #{tpu_custom_call.1} parent=67 // pred_region
          %s1788 = sand.u32 %s171, 1
          %s1789 = scalar_lea.sflag [#allocation4], %s1788
          %s1790 = sand.u32 %s171, 1
          %s1791 = smul.addr %s1790, 32
          %s1792 = scalar_lea.vmem [#allocation10], %s1791
          %1794 = dma.done %s1789, 512
        $region72: #{tpu_custom_call.1} parent=67 // pred_fallthru
          _
        // Predicated region
        $region73: #{tpu_custom_call.1} parent=67 // pred_check
          %p1795 = pneg %p216
        $region74: #{tpu_custom_call.1} parent=67 // pred_check_branch
          %1797 = sbr.rel (%p1795) target = $region76
        $region75: #{tpu_custom_call.1} parent=67 // pred_region
          %s1798 = sand.u32 %s34, 1
          %s1799 = scalar_lea.sflag [#allocation12], %s1798
          %s1800 = sand.u32 %s201, 1
          %s1801 = smul.addr %s1800, 16
          %s1802 = scalar_lea.vmem [#allocation11], %s1801
          %1804 = dma.done %s1799, 256
        $region76: #{tpu_custom_call.1} parent=67 // pred_fallthru
          _
        // Predicated region
        $region77: #{tpu_custom_call.1} parent=67 // pred_check
          %p1805 = pneg %p246
        $region78: #{tpu_custom_call.1} parent=67 // pred_check_branch
          %1807 = sbr.rel (%p1805) target = $region80
        $region79: #{tpu_custom_call.1} parent=67 // pred_region
          %s1808 = sand.u32 %s34, 1
          %s1809 = scalar_lea.sflag [#allocation12], %s1808
          %s1810 = sand.u32 %s231, 1
          %s1811 = smul.addr %s1810, 16
          %s1812 = scalar_lea.vmem [#allocation13], %s1811
          %1814 = dma.done %s1809, 256
        $region80: #{tpu_custom_call.1} parent=67 // pred_fallthru
          _
      $region68: #{tpu_custom_call.1} parent=5 // pred_fallthru
        _
    $region6: #{tpu_custom_call.1} parent=1 // loop_footer
      %s32 = sadd.s32 1, %s28
    $region7: #{tpu_custom_call.1} parent=1 // loop_footer_branch
      %27 = sbr.rel target = $region3
    $region8: #{tpu_custom_call.1} parent=1 // loop_exit
      _
    %1815 = vsyncpa [#allocation3], 1
    %s1816 = scalar_lea.sflag [#allocation3], 1
    %1817 = vsyncpa %s1816, 1
    %1818 = vsyncpa [#allocation6], 1
    %s1819 = scalar_lea.sflag [#allocation6], 1
    %1820 = vsyncpa %s1819, 1
    %1821 = vsyncpa [#allocation9], 1
    %s1822 = scalar_lea.sflag [#allocation9], 1
    %1823 = vsyncpa %s1822, 1
    %1824 = vsyncpa [#allocation4], 1
    %s1825 = scalar_lea.sflag [#allocation4], 1
    %1826 = vsyncpa %s1825, 1
    %1827 = vsyncpa [#allocation12], 1
    %s1828 = scalar_lea.sflag [#allocation12], 1
    %1829 = vsyncpa %s1828, 1

</llo_original>
